<compile_context>
chip_gen: v6e
topology: v6e:2x2x1
jax: 0.10.0
libtpu: 0.0.40
codegen_flags: <defaults>
</compile_context>

<pallas_src>
import functools

import jax
import jax.numpy as jnp
from jax.experimental import pallas as pl
from jax.experimental.pallas import tpu as pltpu


def _triple_conv_kernel(x_ref, m1_ref, b1_ref, m2_ref, b2_ref, m3_ref, b3_ref,
                        o_ref, pad1_ref, pad2_ref, *, H, W, Cin, Cout):
    """One batch image, all three conv layers fused.

    x_ref:  (1, H, W*Cin)           input rows (lane dim = W*Cin)
    m*_ref: (3, W*C, W*Cout)        banded per-dy weight matrices (x-padding folded in)
    b*_ref: (1, W*Cout)             bias tiled over W
    o_ref:  (1, H, W*Cout)          output rows (lane-dense, W*Cout = 128 here)
    pad1_ref: VMEM scratch (H+2, W*Cin)   vertically padded layer-1 input
    pad2_ref: VMEM scratch (H+2, W*Cout)  vertically padded layer-2/3 input (reused)
    """
    WCo = W * Cout

    # Vertical halo rows stay zero forever; zero the buffers exactly once.
    @pl.when(pl.program_id(0) == 0)
    def _():
        pad1_ref[...] = jnp.zeros_like(pad1_ref)
        pad2_ref[...] = jnp.zeros_like(pad2_ref)

    def conv_banded(pad_ref, m_ref, b_ref):
        acc = jnp.zeros((H, WCo), jnp.float32)
        for dy in range(3):  # static unroll: 3 MXU matmuls per layer
            acc = acc + jnp.dot(pad_ref[dy:dy + H, :], m_ref[dy],
                                preferred_element_type=jnp.float32)
        return acc + b_ref[...]

    # Layer 1: conv + ReLU
    pad1_ref[1:H + 1, :] = x_ref[0].astype(jnp.float32)
    a1 = jnp.maximum(conv_banded(pad1_ref, m1_ref, b1_ref), 0.0)

    # Layer 2: conv + ReLU (intermediate stays in VMEM/vregs, never in HBM)
    pad2_ref[1:H + 1, :] = a1
    a2 = jnp.maximum(conv_banded(pad2_ref, m2_ref, b2_ref), 0.0)

    # Layer 3: conv (no ReLU); reuse the same padded scratch buffer.
    pad2_ref[1:H + 1, :] = a2
    a3 = conv_banded(pad2_ref, m3_ref, b3_ref)

    o_ref[0] = a3.astype(o_ref.dtype)


def _banded_weights(w_hwio, W):
    """Expand HWIO (3, 3, Cin, Cout) weights into 3 banded matrices.

    Returns (3, W*Cin, W*Cout) with
      M[dy, wi*Cin + ci, wo*Cout + co] = w[dy, wi - wo + 1, ci, co]
                                         if 0 <= wi - wo + 1 <= 2 else 0
    so that  out_row[h] = sum_dy pad_row[h + dy] @ M[dy]  reproduces the 3x3
    conv with padding=1 (x-direction padding is handled by band truncation,
    y-direction by the zero halo rows of the padded buffer).
    """
    _, _, Cin, Cout = w_hwio.shape
    j = jnp.arange(W * Cin)
    k = jnp.arange(W * Cout)
    wi = j // Cin            # input spatial position
    ci = j % Cin
    wo = k // Cout           # output spatial position
    co = k % Cout
    dx = wi[:, None] - wo[None, :] + 1                 # (J, K) kernel x-tap
    valid = (dx >= 0) & (dx <= 2)
    dx_c = jnp.clip(dx, 0, 2)
    gathered = w_hwio[:, dx_c, ci[:, None], co[None, :]]   # (3, J, K)
    return jnp.where(valid[None, :, :], gathered, 0.0).astype(jnp.float32)


def triple_conv_pallas(x_nhwc, params):
    """x_nhwc: (N, H, W, Cin). Returns (N, H, W, Cout)."""
    N, H, W, Cin = x_nhwc.shape
    Cout = params["w1"].shape[-1]
    dt = x_nhwc.dtype

    # Weight / bias preprocessing (pure XLA, done once per call).
    m1 = _banded_weights(params["w1"], W)
    m2 = _banded_weights(params["w2"], W)
    m3 = _banded_weights(params["w3"], W)
    b1 = jnp.tile(params["b1"].astype(jnp.float32), W).reshape(1, W * Cout)
    b2 = jnp.tile(params["b2"].astype(jnp.float32), W).reshape(1, W * Cout)
    b3 = jnp.tile(params["b3"].astype(jnp.float32), W).reshape(1, W * Cout)

    # Row-flattened (lane-dense) views; these reshapes are layout no-ops.
    x_rows = x_nhwc.reshape(N, H, W * Cin)

    kernel = functools.partial(_triple_conv_kernel, H=H, W=W, Cin=Cin, Cout=Cout)
    y = pl.pallas_call(
        kernel,
        out_shape=jax.ShapeDtypeStruct((N, H, W * Cout), dt),
        grid_spec=pltpu.PrefetchScalarGridSpec(
            num_scalar_prefetch=0,
            grid=(N,),
            in_specs=[
                pl.BlockSpec((1, H, W * Cin), lambda n: (n, 0, 0)),
                pl.BlockSpec((3, W * Cin, W * Cout), lambda n: (0, 0, 0)),
                pl.BlockSpec((1, W * Cout), lambda n: (0, 0)),
                pl.BlockSpec((3, W * Cout, W * Cout), lambda n: (0, 0, 0)),
                pl.BlockSpec((1, W * Cout), lambda n: (0, 0)),
                pl.BlockSpec((3, W * Cout, W * Cout), lambda n: (0, 0, 0)),
                pl.BlockSpec((1, W * Cout), lambda n: (0, 0)),
            ],
            out_specs=pl.BlockSpec((1, H, W * Cout), lambda n: (n, 0, 0)),
            scratch_shapes=[
                pltpu.VMEM((H + 2, W * Cin), jnp.float32),
                pltpu.VMEM((H + 2, W * Cout), jnp.float32),
            ],
        ),
        compiler_params=pltpu.CompilerParams(
            dimension_semantics=("parallel",),
            vmem_limit_bytes=32 * 1024 * 1024,
        ),
    )(x_rows, m1, b1, m2, b2, m3, b3)

    return y.reshape(N, H, W, Cout)


def init_triple_conv_params(key, in_channels, out_channels, dtype=jnp.float32):
    """Deterministic synthetic init. Weights stored HWIO (3, 3, Cin, Cout)."""
    ks = jax.random.split(key, 6)
    scale1 = 1.0 / jnp.sqrt(in_channels * 9.0)
    scale2 = 1.0 / jnp.sqrt(out_channels * 9.0)
    params = {
        "w1": (jax.random.normal(ks[0], (3, 3, in_channels, out_channels), dtype) * scale1),
        "b1": (jax.random.normal(ks[1], (out_channels,), dtype) * scale1),
        "w2": (jax.random.normal(ks[2], (3, 3, out_channels, out_channels), dtype) * scale2),
        "b2": (jax.random.normal(ks[3], (out_channels,), dtype) * scale2),
        "w3": (jax.random.normal(ks[4], (3, 3, out_channels, out_channels), dtype) * scale2),
        "b3": (jax.random.normal(ks[5], (out_channels,), dtype) * scale2),
    }
    return params


@jax.jit
def triple_conv_forward(x_nchw, params):
    """Matches triple_conv.forward: conv-relu-conv-relu-conv on NCHW input."""
    # TODO(synk): NCHW<->NHWC transposes stay in the wrapper; folding them into
    # the kernel would require an in-kernel channel/spatial relayout that costs
    # more than the two tiny XLA transposes at these shapes.
    x = jnp.transpose(x_nchw, (0, 2, 3, 1))          # NCHW -> NHWC
    y = triple_conv_pallas(x, params)                # fused 3x conv kernel
    return jnp.transpose(y, (0, 3, 1, 2))            # NHWC -> NCHW


if __name__ == "__main__":
    key = jax.random.PRNGKey(0)
    k_x, k_p = jax.random.split(key)

    N, Cin, Cout, H, W = 2, 4, 8, 16, 16
    x = jax.random.normal(k_x, (N, Cin, H, W), jnp.float32)
    params = init_triple_conv_params(k_p, Cin, Cout)

    out = triple_conv_forward(x, params)
    out = jax.block_until_ready(out)

    # Sanity check against plain-JAX reference (lax conv, NCHW/OIHW).
    def ref_conv(x_nchw, w_hwio, b, relu):
        w_oihw = jnp.transpose(w_hwio, (3, 2, 0, 1))
        y = jax.lax.conv_general_dilated(
            x_nchw, w_oihw, window_strides=(1, 1), padding=((1, 1), (1, 1)),
            dimension_numbers=("NCHW", "OIHW", "NCHW"))
        y = y + b.reshape(1, -1, 1, 1)
        return jnp.maximum(y, 0.0) if relu else y

    ref = ref_conv(x, params["w1"], params["b1"], True)
    ref = ref_conv(ref, params["w2"], params["b2"], True)
    ref = ref_conv(ref, params["w3"], params["b3"], False)

    assert out.shape == (N, Cout, H, W), out.shape
    assert jnp.allclose(out, ref, atol=1e-4, rtol=1e-4), float(
        jnp.max(jnp.abs(out - ref)))
    print("KERNEL_OK")
</pallas_src>

<mosaic_0001>
module attributes {stable_mosaic.version = 11 : i64} {
  func.func @_triple_conv_kernel(%arg0: i32, %arg1: memref<1x16x64xf32, #tpu.memory_space<vmem>>, %arg2: memref<3x64x128xf32, #tpu.memory_space<vmem>>, %arg3: memref<1x128xf32, #tpu.memory_space<vmem>>, %arg4: memref<3x128x128xf32, #tpu.memory_space<vmem>>, %arg5: memref<1x128xf32, #tpu.memory_space<vmem>>, %arg6: memref<3x128x128xf32, #tpu.memory_space<vmem>>, %arg7: memref<1x128xf32, #tpu.memory_space<vmem>>, %arg8: memref<1x16x128xf32, #tpu.memory_space<vmem>>, %arg9: memref<18x64xf32, #tpu.memory_space<vmem>>, %arg10: memref<18x128xf32, #tpu.memory_space<vmem>>) attributes {dimension_semantics = [#tpu.dimension_semantics<parallel>], iteration_bounds = array<i64: 2>, scalar_prefetch = 0 : i64, scratch_operands = 2 : i64, tpu.core_type = #tpu.core_type<tc>, window_params = [{transform_indices = @transform_0, window_bounds = array<i64: 1, 16, 64>}, {pipeline_mode = #tpu.pipeline_mode<synchronous>, transform_indices = @transform_1, window_bounds = array<i64: 3, 64, 128>}, {pipeline_mode = #tpu.pipeline_mode<synchronous>, transform_indices = @transform_2, window_bounds = array<i64: 1, 128>}, {pipeline_mode = #tpu.pipeline_mode<synchronous>, transform_indices = @transform_3, window_bounds = array<i64: 3, 128, 128>}, {pipeline_mode = #tpu.pipeline_mode<synchronous>, transform_indices = @transform_4, window_bounds = array<i64: 1, 128>}, {pipeline_mode = #tpu.pipeline_mode<synchronous>, transform_indices = @transform_5, window_bounds = array<i64: 3, 128, 128>}, {pipeline_mode = #tpu.pipeline_mode<synchronous>, transform_indices = @transform_6, window_bounds = array<i64: 1, 128>}, {transform_indices = @transform_7, window_bounds = array<i64: 1, 16, 128>}]} {
    %c0_i32 = arith.constant 0 : i32
    %0 = arith.cmpi eq, %arg0, %c0_i32 : i32
    %1 = arith.extui %0 : i1 to i32
    %c0_i32_0 = arith.constant 0 : i32
    %2 = arith.cmpi ne, %1, %c0_i32_0 : i32
    scf.if %2 {
      %cst_74 = arith.constant 0.000000e+00 : f32
      %72 = vector.broadcast %cst_74 : f32 to vector<18x64xf32>
      %c0_75 = arith.constant 0 : index
      %c0_76 = arith.constant 0 : index
      %73 = vector.load %arg9[%c0_75, %c0_76] : memref<18x64xf32, #tpu.memory_space<vmem>>, vector<18x64xf32>
      tpu.vector_store %arg9[%c0_75, %c0_76], %72 {strides = array<i32>} : memref<18x64xf32, #tpu.memory_space<vmem>>, vector<18x64xf32>,
      %cst_77 = arith.constant 0.000000e+00 : f32
      %74 = vector.broadcast %cst_77 : f32 to vector<18x128xf32>
      %c0_78 = arith.constant 0 : index
      %c0_79 = arith.constant 0 : index
      %75 = vector.load %arg10[%c0_78, %c0_79] : memref<18x128xf32, #tpu.memory_space<vmem>>, vector<18x128xf32>
      tpu.vector_store %arg10[%c0_78, %c0_79], %74 {strides = array<i32>} : memref<18x128xf32, #tpu.memory_space<vmem>>, vector<18x128xf32>,
    } else {
    }
    %c0 = arith.constant 0 : index
    %c0_1 = arith.constant 0 : index
    %c0_2 = arith.constant 0 : index
    %3 = vector.load %arg1[%c0, %c0_1, %c0_2] : memref<1x16x64xf32, #tpu.memory_space<vmem>>, vector<1x16x64xf32>
    %4 = vector.shape_cast %3 : vector<1x16x64xf32> to vector<16x64xf32>
    %c1 = arith.constant 1 : index
    %c0_3 = arith.constant 0 : index
    %5 = vector.load %arg9[%c1, %c0_3] : memref<18x64xf32, #tpu.memory_space<vmem>>, vector<16x64xf32>
    tpu.vector_store %arg9[%c1, %c0_3], %4 {strides = array<i32>} : memref<18x64xf32, #tpu.memory_space<vmem>>, vector<16x64xf32>,
    %cst = arith.constant 0.000000e+00 : f32
    %6 = vector.broadcast %cst : f32 to vector<16x128xf32>
    %c0_4 = arith.constant 0 : index
    %c0_5 = arith.constant 0 : index
    %7 = vector.load %arg9[%c0_4, %c0_5] : memref<18x64xf32, #tpu.memory_space<vmem>>, vector<16x64xf32>
    %c0_6 = arith.constant 0 : index
    %c0_7 = arith.constant 0 : index
    %c0_8 = arith.constant 0 : index
    %8 = vector.load %arg2[%c0_6, %c0_7, %c0_8] : memref<3x64x128xf32, #tpu.memory_space<vmem>>, vector<1x64x128xf32>
    %9 = vector.shape_cast %8 : vector<1x64x128xf32> to vector<64x128xf32>
    %cst_9 = arith.constant dense<0.000000e+00> : vector<16x128xf32>
    %10 = tpu.matmul %7, %9, %cst_9 {dimension_numbers = #tpu.dot_dimension_numbers<[1], [0], [0], [1], [0, 0, 1, 1], [], []>} : vector<16x64xf32>, vector<64x128xf32>, vector<16x128xf32> -> vector<16x128xf32>
    %11 = arith.addf %6, %10 : vector<16x128xf32>
    %c1_10 = arith.constant 1 : index
    %c0_11 = arith.constant 0 : index
    %12 = vector.load %arg9[%c1_10, %c0_11] : memref<18x64xf32, #tpu.memory_space<vmem>>, vector<16x64xf32>
    %c1_12 = arith.constant 1 : index
    %c0_13 = arith.constant 0 : index
    %c0_14 = arith.constant 0 : index
    %13 = vector.load %arg2[%c1_12, %c0_13, %c0_14] : memref<3x64x128xf32, #tpu.memory_space<vmem>>, vector<1x64x128xf32>
    %14 = vector.shape_cast %13 : vector<1x64x128xf32> to vector<64x128xf32>
    %cst_15 = arith.constant dense<0.000000e+00> : vector<16x128xf32>
    %15 = tpu.matmul %12, %14, %cst_15 {dimension_numbers = #tpu.dot_dimension_numbers<[1], [0], [0], [1], [0, 0, 1, 1], [], []>} : vector<16x64xf32>, vector<64x128xf32>, vector<16x128xf32> -> vector<16x128xf32>
    %16 = arith.addf %11, %15 : vector<16x128xf32>
    %c2 = arith.constant 2 : index
    %c0_16 = arith.constant 0 : index
    %17 = vector.load %arg9[%c2, %c0_16] : memref<18x64xf32, #tpu.memory_space<vmem>>, vector<16x64xf32>
    %c2_17 = arith.constant 2 : index
    %c0_18 = arith.constant 0 : index
    %c0_19 = arith.constant 0 : index
    %18 = vector.load %arg2[%c2_17, %c0_18, %c0_19] : memref<3x64x128xf32, #tpu.memory_space<vmem>>, vector<1x64x128xf32>
    %19 = vector.shape_cast %18 : vector<1x64x128xf32> to vector<64x128xf32>
    %cst_20 = arith.constant dense<0.000000e+00> : vector<16x128xf32>
    %20 = tpu.matmul %17, %19, %cst_20 {dimension_numbers = #tpu.dot_dimension_numbers<[1], [0], [0], [1], [0, 0, 1, 1], [], []>} : vector<16x64xf32>, vector<64x128xf32>, vector<16x128xf32> -> vector<16x128xf32>
    %21 = arith.addf %16, %20 : vector<16x128xf32>
    %c0_21 = arith.constant 0 : index
    %c0_22 = arith.constant 0 : index
    %22 = vector.load %arg3[%c0_21, %c0_22] : memref<1x128xf32, #tpu.memory_space<vmem>>, vector<1x128xf32>
    %23 = vector.broadcast %22 : vector<1x128xf32> to vector<16x128xf32>
    %24 = arith.addf %21, %23 : vector<16x128xf32>
    %cst_23 = arith.constant 0.000000e+00 : f32
    %25 = vector.broadcast %cst_23 : f32 to vector<16x128xf32>
    %26 = arith.maximumf %24, %25 : vector<16x128xf32>
    %c1_24 = arith.constant 1 : index
    %c0_25 = arith.constant 0 : index
    %27 = vector.load %arg10[%c1_24, %c0_25] : memref<18x128xf32, #tpu.memory_space<vmem>>, vector<16x128xf32>
    tpu.vector_store %arg10[%c1_24, %c0_25], %26 {strides = array<i32>} : memref<18x128xf32, #tpu.memory_space<vmem>>, vector<16x128xf32>,
    %cst_26 = arith.constant 0.000000e+00 : f32
    %28 = vector.broadcast %cst_26 : f32 to vector<16x128xf32>
    %c0_27 = arith.constant 0 : index
    %c0_28 = arith.constant 0 : index
    %29 = vector.load %arg10[%c0_27, %c0_28] : memref<18x128xf32, #tpu.memory_space<vmem>>, vector<16x128xf32>
    %c0_29 = arith.constant 0 : index
    %c0_30 = arith.constant 0 : index
    %c0_31 = arith.constant 0 : index
    %30 = vector.load %arg4[%c0_29, %c0_30, %c0_31] : memref<3x128x128xf32, #tpu.memory_space<vmem>>, vector<1x128x128xf32>
    %31 = vector.shape_cast %30 : vector<1x128x128xf32> to vector<128x128xf32>
    %cst_32 = arith.constant dense<0.000000e+00> : vector<16x128xf32>
    %32 = tpu.matmul %29, %31, %cst_32 {dimension_numbers = #tpu.dot_dimension_numbers<[1], [0], [0], [1], [0, 0, 1, 1], [], []>} : vector<16x128xf32>, vector<128x128xf32>, vector<16x128xf32> -> vector<16x128xf32>
    %33 = arith.addf %28, %32 : vector<16x128xf32>
    %c1_33 = arith.constant 1 : index
    %c0_34 = arith.constant 0 : index
    %34 = vector.load %arg10[%c1_33, %c0_34] : memref<18x128xf32, #tpu.memory_space<vmem>>, vector<16x128xf32>
    %c1_35 = arith.constant 1 : index
    %c0_36 = arith.constant 0 : index
    %c0_37 = arith.constant 0 : index
    %35 = vector.load %arg4[%c1_35, %c0_36, %c0_37] : memref<3x128x128xf32, #tpu.memory_space<vmem>>, vector<1x128x128xf32>
    %36 = vector.shape_cast %35 : vector<1x128x128xf32> to vector<128x128xf32>
    %cst_38 = arith.constant dense<0.000000e+00> : vector<16x128xf32>
    %37 = tpu.matmul %34, %36, %cst_38 {dimension_numbers = #tpu.dot_dimension_numbers<[1], [0], [0], [1], [0, 0, 1, 1], [], []>} : vector<16x128xf32>, vector<128x128xf32>, vector<16x128xf32> -> vector<16x128xf32>
    %38 = arith.addf %33, %37 : vector<16x128xf32>
    %c2_39 = arith.constant 2 : index
    %c0_40 = arith.constant 0 : index
    %39 = vector.load %arg10[%c2_39, %c0_40] : memref<18x128xf32, #tpu.memory_space<vmem>>, vector<16x128xf32>
    %c2_41 = arith.constant 2 : index
    %c0_42 = arith.constant 0 : index
    %c0_43 = arith.constant 0 : index
    %40 = vector.load %arg4[%c2_41, %c0_42, %c0_43] : memref<3x128x128xf32, #tpu.memory_space<vmem>>, vector<1x128x128xf32>
    %41 = vector.shape_cast %40 : vector<1x128x128xf32> to vector<128x128xf32>
    %cst_44 = arith.constant dense<0.000000e+00> : vector<16x128xf32>
    %42 = tpu.matmul %39, %41, %cst_44 {dimension_numbers = #tpu.dot_dimension_numbers<[1], [0], [0], [1], [0, 0, 1, 1], [], []>} : vector<16x128xf32>, vector<128x128xf32>, vector<16x128xf32> -> vector<16x128xf32>
    %43 = arith.addf %38, %42 : vector<16x128xf32>
    %c0_45 = arith.constant 0 : index
    %c0_46 = arith.constant 0 : index
    %44 = vector.load %arg5[%c0_45, %c0_46] : memref<1x128xf32, #tpu.memory_space<vmem>>, vector<1x128xf32>
    %45 = vector.broadcast %44 : vector<1x128xf32> to vector<16x128xf32>
    %46 = arith.addf %43, %45 : vector<16x128xf32>
    %cst_47 = arith.constant 0.000000e+00 : f32
    %47 = vector.broadcast %cst_47 : f32 to vector<16x128xf32>
    %48 = arith.maximumf %46, %47 : vector<16x128xf32>
    %c1_48 = arith.constant 1 : index
    %c0_49 = arith.constant 0 : index
    %49 = vector.load %arg10[%c1_48, %c0_49] : memref<18x128xf32, #tpu.memory_space<vmem>>, vector<16x128xf32>
    tpu.vector_store %arg10[%c1_48, %c0_49], %48 {strides = array<i32>} : memref<18x128xf32, #tpu.memory_space<vmem>>, vector<16x128xf32>,
    %cst_50 = arith.constant 0.000000e+00 : f32
    %50 = vector.broadcast %cst_50 : f32 to vector<16x128xf32>
    %c0_51 = arith.constant 0 : index
    %c0_52 = arith.constant 0 : index
    %51 = vector.load %arg10[%c0_51, %c0_52] : memref<18x128xf32, #tpu.memory_space<vmem>>, vector<16x128xf32>
    %c0_53 = arith.constant 0 : index
    %c0_54 = arith.constant 0 : index
    %c0_55 = arith.constant 0 : index
    %52 = vector.load %arg6[%c0_53, %c0_54, %c0_55] : memref<3x128x128xf32, #tpu.memory_space<vmem>>, vector<1x128x128xf32>
    %53 = vector.shape_cast %52 : vector<1x128x128xf32> to vector<128x128xf32>
    %cst_56 = arith.constant dense<0.000000e+00> : vector<16x128xf32>
    %54 = tpu.matmul %51, %53, %cst_56 {dimension_numbers = #tpu.dot_dimension_numbers<[1], [0], [0], [1], [0, 0, 1, 1], [], []>} : vector<16x128xf32>, vector<128x128xf32>, vector<16x128xf32> -> vector<16x128xf32>
    %55 = arith.addf %50, %54 : vector<16x128xf32>
    %c1_57 = arith.constant 1 : index
    %c0_58 = arith.constant 0 : index
    %56 = vector.load %arg10[%c1_57, %c0_58] : memref<18x128xf32, #tpu.memory_space<vmem>>, vector<16x128xf32>
    %c1_59 = arith.constant 1 : index
    %c0_60 = arith.constant 0 : index
    %c0_61 = arith.constant 0 : index
    %57 = vector.load %arg6[%c1_59, %c0_60, %c0_61] : memref<3x128x128xf32, #tpu.memory_space<vmem>>, vector<1x128x128xf32>
    %58 = vector.shape_cast %57 : vector<1x128x128xf32> to vector<128x128xf32>
    %cst_62 = arith.constant dense<0.000000e+00> : vector<16x128xf32>
    %59 = tpu.matmul %56, %58, %cst_62 {dimension_numbers = #tpu.dot_dimension_numbers<[1], [0], [0], [1], [0, 0, 1, 1], [], []>} : vector<16x128xf32>, vector<128x128xf32>, vector<16x128xf32> -> vector<16x128xf32>
    %60 = arith.addf %55, %59 : vector<16x128xf32>
    %c2_63 = arith.constant 2 : index
    %c0_64 = arith.constant 0 : index
    %61 = vector.load %arg10[%c2_63, %c0_64] : memref<18x128xf32, #tpu.memory_space<vmem>>, vector<16x128xf32>
    %c2_65 = arith.constant 2 : index
    %c0_66 = arith.constant 0 : index
    %c0_67 = arith.constant 0 : index
    %62 = vector.load %arg6[%c2_65, %c0_66, %c0_67] : memref<3x128x128xf32, #tpu.memory_space<vmem>>, vector<1x128x128xf32>
    %63 = vector.shape_cast %62 : vector<1x128x128xf32> to vector<128x128xf32>
    %cst_68 = arith.constant dense<0.000000e+00> : vector<16x128xf32>
    %64 = tpu.matmul %61, %63, %cst_68 {dimension_numbers = #tpu.dot_dimension_numbers<[1], [0], [0], [1], [0, 0, 1, 1], [], []>} : vector<16x128xf32>, vector<128x128xf32>, vector<16x128xf32> -> vector<16x128xf32>
    %65 = arith.addf %60, %64 : vector<16x128xf32>
    %c0_69 = arith.constant 0 : index
    %c0_70 = arith.constant 0 : index
    %66 = vector.load %arg7[%c0_69, %c0_70] : memref<1x128xf32, #tpu.memory_space<vmem>>, vector<1x128xf32>
    %67 = vector.broadcast %66 : vector<1x128xf32> to vector<16x128xf32>
    %68 = arith.addf %65, %67 : vector<16x128xf32>
    %c0_71 = arith.constant 0 : index
    %c0_72 = arith.constant 0 : index
    %c0_73 = arith.constant 0 : index
    %69 = vector.load %arg8[%c0_71, %c0_72, %c0_73] : memref<1x16x128xf32, #tpu.memory_space<vmem>>, vector<1x16x128xf32>
    %70 = vector.shape_cast %69 : vector<1x16x128xf32> to vector<16x128xf32>
    %71 = vector.shape_cast %68 : vector<16x128xf32> to vector<1x16x128xf32>
    tpu.vector_store %arg8[%c0_71, %c0_72, %c0_73], %71 {strides = array<i32>} : memref<1x16x128xf32, #tpu.memory_space<vmem>>, vector<1x16x128xf32>,
    return
  }
  func.func @transform_0(%arg0: i32) -> (i32, i32, i32) {
    %c0_i32 = arith.constant 0 : i32
    %c0_i32_0 = arith.constant 0 : i32
    %c0_i32_1 = arith.constant 0 : i32
    return %arg0, %c0_i32, %c0_i32_0 : i32, i32, i32
  }
  func.func @transform_1(%arg0: i32) -> (i32, i32, i32) {
    %c0_i32 = arith.constant 0 : i32
    %c0_i32_0 = arith.constant 0 : i32
    %c0_i32_1 = arith.constant 0 : i32
    %c0_i32_2 = arith.constant 0 : i32
    return %c0_i32, %c0_i32_0, %c0_i32_1 : i32, i32, i32
  }
  func.func @transform_2(%arg0: i32) -> (i32, i32) {
    %c0_i32 = arith.constant 0 : i32
    %c0_i32_0 = arith.constant 0 : i32
    %c0_i32_1 = arith.constant 0 : i32
    return %c0_i32, %c0_i32_0 : i32, i32
  }
  func.func @transform_3(%arg0: i32) -> (i32, i32, i32) {
    %c0_i32 = arith.constant 0 : i32
    %c0_i32_0 = arith.constant 0 : i32
    %c0_i32_1 = arith.constant 0 : i32
    %c0_i32_2 = arith.constant 0 : i32
    return %c0_i32, %c0_i32_0, %c0_i32_1 : i32, i32, i32
  }
  func.func @transform_4(%arg0: i32) -> (i32, i32) {
    %c0_i32 = arith.constant 0 : i32
    %c0_i32_0 = arith.constant 0 : i32
    %c0_i32_1 = arith.constant 0 : i32
    return %c0_i32, %c0_i32_0 : i32, i32
  }
  func.func @transform_5(%arg0: i32) -> (i32, i32, i32) {
    %c0_i32 = arith.constant 0 : i32
    %c0_i32_0 = arith.constant 0 : i32
    %c0_i32_1 = arith.constant 0 : i32
    %c0_i32_2 = arith.constant 0 : i32
    return %c0_i32, %c0_i32_0, %c0_i32_1 : i32, i32, i32
  }
  func.func @transform_6(%arg0: i32) -> (i32, i32) {
    %c0_i32 = arith.constant 0 : i32
    %c0_i32_0 = arith.constant 0 : i32
    %c0_i32_1 = arith.constant 0 : i32
    return %c0_i32, %c0_i32_0 : i32, i32
  }
  func.func @transform_7(%arg0: i32) -> (i32, i32, i32) {
    %c0_i32 = arith.constant 0 : i32
    %c0_i32_0 = arith.constant 0 : i32
    %c0_i32_1 = arith.constant 0 : i32
    return %arg0, %c0_i32, %c0_i32_0 : i32, i32, i32
  }
}

</mosaic_0001>

<llo_original>
// kernel: tile.18
$region0: #{tile.18}
  #allocation0 [shape = 's32[1]{0}', space=sflag, size = 0x4, scoped, tag = 'scoped memory for tile.18']
  %s0 = inlined_call_operand.vmem [shape: f32[8], index: 0, kind: input, shape index: {}]
  %s1 = inlined_call_operand.vmem [shape: f32[16,8], index: 1, kind: output, shape index: {}]
  // Predicated region
  $region2: #{tile.18} parent=0 // pred_check
    _
  $region3: #{tile.18} parent=0 // pred_check_branch
    %3 = sbr.rel (0) target = $region5
  $region4: #{tile.18} parent=0 // pred_region
    _
  $region5: #{tile.18} parent=0 // pred_fallthru
    _
  %v4 = vld [vmem:[%s0] ss:$0 sm:$0xff]
  %5 = vst [vmem:[%s1] sm:$0xff] %v4
  %s6 = scalar_lea.vmem %s1, 8
  %7 = vst [vmem:[%s6] sm:$0xff] %v4

// kernel: tile.19
$region0: #{tile.19}
  %s0 = inlined_call_operand.vmem [shape: f32[16,8], index: 0, kind: input, shape index: {}]
  %s1 = inlined_call_operand.vmem [shape: f32[1,128], index: 1, kind: output, shape index: {}]
  $region1: #{tile.19} parent=0
    #allocation0 [shape = 'u8[4096]{0}', space=vmem, size = 0x1000, scoped, tag = 'scoped mem for output reshape']
    %v2 = vld [vmem:[%s0] sm:$0x1]
    %vm3 = vcmask 64512
    %4 = vst.msk [vmem:[#allocation0] sm:$0x1] %vm3, %v2
    %s5 = scalar_lea.vmem %s0, 15
    %v6 = vld [vmem:[%s5] sm:$0x1]
    %7 = vrot.lane.b32.xlu0 %v6, 120
    %v8 = vpop.permute.xlu0 %7
    %vm9 = vcmask 1048512
    %10 = vst.msk [vmem:[#allocation0] sm:$0x1] %vm9, %v8
    %s11 = scalar_lea.vmem %s0, 14
    %v12 = vld [vmem:[%s11] sm:$0x1]
    %13 = vrot.lane.b32.xlu0 %v12, 112
    %v14 = vpop.permute.xlu0 %13
    %vm15 = vcmask 982912
    %16 = vst.msk [vmem:[#allocation0] sm:$0x1] %vm15, %v14
    %s17 = scalar_lea.vmem %s0, 13
    %v18 = vld [vmem:[%s17] sm:$0x1]
    %19 = vrot.lane.b32.xlu0 %v18, 104
    %v20 = vpop.permute.xlu0 %19
    %vm21 = vcmask 917312
    %22 = vst.msk [vmem:[#allocation0] sm:$0x1] %vm21, %v20
    %s23 = scalar_lea.vmem %s0, 12
    %v24 = vld [vmem:[%s23] sm:$0x1]
    %25 = vrot.lane.b32.xlu0 %v24, 96
    %v26 = vpop.permute.xlu0 %25
    %vm27 = vcmask 851712
    %28 = vst.msk [vmem:[#allocation0] sm:$0x1] %vm27, %v26
    %s29 = scalar_lea.vmem %s0, 11
    %v30 = vld [vmem:[%s29] sm:$0x1]
    %31 = vrot.lane.b32.xlu0 %v30, 88
    %v32 = vpop.permute.xlu0 %31
    %vm33 = vcmask 786112
    %34 = vst.msk [vmem:[#allocation0] sm:$0x1] %vm33, %v32
    %s35 = scalar_lea.vmem %s0, 10
    %v36 = vld [vmem:[%s35] sm:$0x1]
    %37 = vrot.lane.b32.xlu0 %v36, 80
    %v38 = vpop.permute.xlu0 %37
    %vm39 = vcmask 720512
    %40 = vst.msk [vmem:[#allocation0] sm:$0x1] %vm39, %v38
    %s41 = scalar_lea.vmem %s0, 9
    %v42 = vld [vmem:[%s41] sm:$0x1]
    %43 = vrot.lane.b32.xlu0 %v42, 72
    %v44 = vpop.permute.xlu0 %43
    %vm45 = vcmask 654912
    %46 = vst.msk [vmem:[#allocation0] sm:$0x1] %vm45, %v44
    %s47 = scalar_lea.vmem %s0, 8
    %v48 = vld [vmem:[%s47] sm:$0x1]
    %49 = vrot.lane.b32.xlu0 %v48, 64
    %v50 = vpop.permute.xlu0 %49
    %vm51 = vcmask 589312
    %52 = vst.msk [vmem:[#allocation0] sm:$0x1] %vm51, %v50
    %s53 = scalar_lea.vmem %s0, 7
    %v54 = vld [vmem:[%s53] sm:$0x1]
    %55 = vrot.lane.b32.xlu0 %v54, 56
    %v56 = vpop.permute.xlu0 %55
    %vm57 = vcmask 523712
    %58 = vst.msk [vmem:[#allocation0] sm:$0x1] %vm57, %v56
    %s59 = scalar_lea.vmem %s0, 6
    %v60 = vld [vmem:[%s59] sm:$0x1]
    %61 = vrot.lane.b32.xlu0 %v60, 48
    %v62 = vpop.permute.xlu0 %61
    %vm63 = vcmask 458112
    %64 = vst.msk [vmem:[#allocation0] sm:$0x1] %vm63, %v62
    %s65 = scalar_lea.vmem %s0, 5
    %v66 = vld [vmem:[%s65] sm:$0x1]
    %67 = vrot.lane.b32.xlu0 %v66, 40
    %v68 = vpop.permute.xlu0 %67
    %vm69 = vcmask 392512
    %70 = vst.msk [vmem:[#allocation0] sm:$0x1] %vm69, %v68
    %s71 = scalar_lea.vmem %s0, 4
    %v72 = vld [vmem:[%s71] sm:$0x1]
    %73 = vrot.lane.b32.xlu0 %v72, 32
    %v74 = vpop.permute.xlu0 %73
    %vm75 = vcmask 326912
    %76 = vst.msk [vmem:[#allocation0] sm:$0x1] %vm75, %v74
    %s77 = scalar_lea.vmem %s0, 3
    %v78 = vld [vmem:[%s77] sm:$0x1]
    %79 = vrot.lane.b32.xlu0 %v78, 24
    %v80 = vpop.permute.xlu0 %79
    %vm81 = vcmask 261312
    %82 = vst.msk [vmem:[#allocation0] sm:$0x1] %vm81, %v80
    %s83 = scalar_lea.vmem %s0, 2
    %v84 = vld [vmem:[%s83] sm:$0x1]
    %85 = vrot.lane.b32.xlu0 %v84, 16
    %v86 = vpop.permute.xlu0 %85
    %vm87 = vcmask 195712
    %88 = vst.msk [vmem:[#allocation0] sm:$0x1] %vm87, %v86
    %s89 = scalar_lea.vmem %s0, 1
    %v90 = vld [vmem:[%s89] sm:$0x1]
    %91 = vrot.lane.b32.xlu0 %v90, 8
    %v92 = vpop.permute.xlu0 %91
    %vm93 = vcmask 130112
    %94 = vst.msk [vmem:[#allocation0] sm:$0x1] %vm93, %v92
    %s96 = sshll.u32 1, 1
    %s97 = ssub.s32 %s96, 1
    %v99 = vld [vmem:[#allocation0] sm:%s97]
    %s100 = sshll.u32 1, 1
    %s101 = ssub.s32 %s100, 1
    %102 = vst [vmem:[%s1] sm:%s101] %v99

// kernel: triple_conv_forward.1
$region0: #{triple_conv_forward.1}
  #allocation0 [shape = 'u32[]', space=smem, size = 0x4, offset = 0x4, fixed_abs, tag = 'smem constant byte address 0x4 - core index']
  #allocation1 [shape = 'u32[144,128]{1,0:T(1,128)}', space=vmem, size = 0x12000, scoped, tag = 'internal scratch']
  #allocation2 [shape = 'f32[18,64]{1,0:T(8,128)}', space=vmem, size = 0x3000, scoped, tag = 'scratch operand']
  #allocation3 [shape = 'f32[18,128]{1,0:T(8,128)}', space=vmem, size = 0x3000, scoped, tag = 'scratch operand']
  %s0 = inlined_call_operand.vmem [shape: f32[2,16,64], index: 0, kind: input, shape index: {}]
  %s1 = inlined_call_operand.vmem [shape: f32[3,64,128], index: 1, kind: input, shape index: {}]
  %s2 = inlined_call_operand.vmem [shape: f32[1,128], index: 2, kind: input, shape index: {}]
  %s3 = inlined_call_operand.vmem [shape: f32[3,128,128], index: 3, kind: input, shape index: {}]
  %s4 = inlined_call_operand.vmem [shape: f32[1,128], index: 4, kind: input, shape index: {}]
  %s5 = inlined_call_operand.vmem [shape: f32[3,128,128], index: 5, kind: input, shape index: {}]
  %s6 = inlined_call_operand.vmem [shape: f32[1,128], index: 6, kind: input, shape index: {}]
  %s7 = inlined_call_operand.vmem [shape: f32[2,16,128], index: 7, kind: output, shape index: {}]
  %s8 = sld [smem:[#allocation0]]
  $region65: #{triple_conv_forward.1} parent=0
    _
  %s10 = ssub.s32 1, %s8
  %s11 = scalar_select 0, %s10, %s8
  loop: start=0, step=1, limit=4
  $region2: #{triple_conv_forward.1} parent=0 // loop_pre_header
    _
  $region3: #{triple_conv_forward.1} parent=0 // loop_header
    %s13 = sphi 0, %s17
    %p14 = scmp.ge.s32.totalorder %s13, 4
    %s23 = sphi 0, %s25
    %s26 = sphi 0, %s23
    %s27 = sphi 0, %s26
    %s43 = sphi 0, %s27
    %s47 = sphi 0, %s47
    %s49 = sphi 0, %s47
    %s50 = sphi 0, %s49
    %s64 = sphi 0, %s50
    %s68 = sphi 0, %s68
    %s70 = sphi 0, %s68
    %s71 = sphi 0, %s70
    %s85 = sphi 0, %s71
    %s89 = sphi 0, %s89
    %s91 = sphi 0, %s89
    %s92 = sphi 0, %s91
    %s106 = sphi 0, %s92
    %s110 = sphi 0, %s110
    %s112 = sphi 0, %s110
    %s113 = sphi 0, %s112
    %s127 = sphi 0, %s113
    %s131 = sphi 0, %s131
    %s133 = sphi 0, %s131
    %s134 = sphi 0, %s133
    %s148 = sphi 0, %s134
    %s152 = sphi 0, %s152
    %s154 = sphi 0, %s152
    %s155 = sphi 0, %s154
    %s169 = sphi 0, %s155
    %s175 = sphi 0, %s177
    %s178 = sphi 0, %s175
    %s179 = sphi 0, %s178
    %s195 = sphi 0, %s179
  $region4: #{triple_conv_forward.1} parent=0 // loop_header_branch
    %16 = sbr.rel (%p14) target = $region8
  $region5: #{triple_conv_forward.1} parent=0 // loop_body
    %s18 = ssub.s32 %s13, 1
    %s19 = ssub.s32 %s13, 2
    %s20 = sadd.s32 %s13, 1
    %s21 = ssub.s32 %s13, %s20
    %p22 = scmp.eq.s32.totalorder %s21, 0
    %s24 = sadd.s32 %s23, 1
    %s25 = scalar_select %p22, %s23, %s24
    %p28 = pneg %p22
    %p29 = scmp.eq.s32.totalorder %s13, 1
    %p30 = por %p28, %p29
    %p31 = scmp.ne.s32.totalorder %s23, %s26
    %p32 = scmp.eq.s32.totalorder %s13, 0
    %p33 = por %p31, %p32
    %p34 = scmp.ne.s32.totalorder %s23, %s26
    %p35 = scmp.eq.s32.totalorder %s18, 1
    %p36 = por %p34, %p35
    %p37 = scmp.ne.s32.totalorder %s26, %s27
    %p38 = scmp.eq.s32.totalorder %s18, 0
    %p39 = por %p37, %p38
    %p40 = scmp.ne.s32.totalorder %s26, %s27
    %p41 = scmp.eq.s32.totalorder %s19, 1
    %p42 = por %p40, %p41
    %p44 = scmp.ne.s32.totalorder %s27, %s43
    %p45 = scmp.eq.s32.totalorder %s19, 0
    %p46 = por %p44, %p45
    %s48 = sadd.s32 %s47, 1
    %p51 = scmp.eq.s32.totalorder %s13, 1
    %p52 = scmp.ne.s32.totalorder %s47, %s49
    %p53 = scmp.eq.s32.totalorder %s13, 0
    %p54 = por %p52, %p53
    %p55 = scmp.ne.s32.totalorder %s47, %s49
    %p56 = scmp.eq.s32.totalorder %s18, 1
    %p57 = por %p55, %p56
    %p58 = scmp.ne.s32.totalorder %s49, %s50
    %p59 = scmp.eq.s32.totalorder %s18, 0
    %p60 = por %p58, %p59
    %p61 = scmp.ne.s32.totalorder %s49, %s50
    %p62 = scmp.eq.s32.totalorder %s19, 1
    %p63 = por %p61, %p62
    %p65 = scmp.ne.s32.totalorder %s50, %s64
    %p66 = scmp.eq.s32.totalorder %s19, 0
    %p67 = por %p65, %p66
    %s69 = sadd.s32 %s68, 1
    %p72 = scmp.eq.s32.totalorder %s13, 1
    %p73 = scmp.ne.s32.totalorder %s68, %s70
    %p74 = scmp.eq.s32.totalorder %s13, 0
    %p75 = por %p73, %p74
    %p76 = scmp.ne.s32.totalorder %s68, %s70
    %p77 = scmp.eq.s32.totalorder %s18, 1
    %p78 = por %p76, %p77
    %p79 = scmp.ne.s32.totalorder %s70, %s71
    %p80 = scmp.eq.s32.totalorder %s18, 0
    %p81 = por %p79, %p80
    %p82 = scmp.ne.s32.totalorder %s70, %s71
    %p83 = scmp.eq.s32.totalorder %s19, 1
    %p84 = por %p82, %p83
    %p86 = scmp.ne.s32.totalorder %s71, %s85
    %p87 = scmp.eq.s32.totalorder %s19, 0
    %p88 = por %p86, %p87
    %s90 = sadd.s32 %s89, 1
    %p93 = scmp.eq.s32.totalorder %s13, 1
    %p94 = scmp.ne.s32.totalorder %s89, %s91
    %p95 = scmp.eq.s32.totalorder %s13, 0
    %p96 = por %p94, %p95
    %p97 = scmp.ne.s32.totalorder %s89, %s91
    %p98 = scmp.eq.s32.totalorder %s18, 1
    %p99 = por %p97, %p98
    %p100 = scmp.ne.s32.totalorder %s91, %s92
    %p101 = scmp.eq.s32.totalorder %s18, 0
    %p102 = por %p100, %p101
    %p103 = scmp.ne.s32.totalorder %s91, %s92
    %p104 = scmp.eq.s32.totalorder %s19, 1
    %p105 = por %p103, %p104
    %p107 = scmp.ne.s32.totalorder %s92, %s106
    %p108 = scmp.eq.s32.totalorder %s19, 0
    %p109 = por %p107, %p108
    %s111 = sadd.s32 %s110, 1
    %p114 = scmp.eq.s32.totalorder %s13, 1
    %p115 = scmp.ne.s32.totalorder %s110, %s112
    %p116 = scmp.eq.s32.totalorder %s13, 0
    %p117 = por %p115, %p116
    %p118 = scmp.ne.s32.totalorder %s110, %s112
    %p119 = scmp.eq.s32.totalorder %s18, 1
    %p120 = por %p118, %p119
    %p121 = scmp.ne.s32.totalorder %s112, %s113
    %p122 = scmp.eq.s32.totalorder %s18, 0
    %p123 = por %p121, %p122
    %p124 = scmp.ne.s32.totalorder %s112, %s113
    %p125 = scmp.eq.s32.totalorder %s19, 1
    %p126 = por %p124, %p125
    %p128 = scmp.ne.s32.totalorder %s113, %s127
    %p129 = scmp.eq.s32.totalorder %s19, 0
    %p130 = por %p128, %p129
    %s132 = sadd.s32 %s131, 1
    %p135 = scmp.eq.s32.totalorder %s13, 1
    %p136 = scmp.ne.s32.totalorder %s131, %s133
    %p137 = scmp.eq.s32.totalorder %s13, 0
    %p138 = por %p136, %p137
    %p139 = scmp.ne.s32.totalorder %s131, %s133
    %p140 = scmp.eq.s32.totalorder %s18, 1
    %p141 = por %p139, %p140
    %p142 = scmp.ne.s32.totalorder %s133, %s134
    %p143 = scmp.eq.s32.totalorder %s18, 0
    %p144 = por %p142, %p143
    %p145 = scmp.ne.s32.totalorder %s133, %s134
    %p146 = scmp.eq.s32.totalorder %s19, 1
    %p147 = por %p145, %p146
    %p149 = scmp.ne.s32.totalorder %s134, %s148
    %p150 = scmp.eq.s32.totalorder %s19, 0
    %p151 = por %p149, %p150
    %s153 = sadd.s32 %s152, 1
    %p156 = scmp.eq.s32.totalorder %s13, 1
    %p157 = scmp.ne.s32.totalorder %s152, %s154
    %p158 = scmp.eq.s32.totalorder %s13, 0
    %p159 = por %p157, %p158
    %p160 = scmp.ne.s32.totalorder %s152, %s154
    %p161 = scmp.eq.s32.totalorder %s18, 1
    %p162 = por %p160, %p161
    %p163 = scmp.ne.s32.totalorder %s154, %s155
    %p164 = scmp.eq.s32.totalorder %s18, 0
    %p165 = por %p163, %p164
    %p166 = scmp.ne.s32.totalorder %s154, %s155
    %p167 = scmp.eq.s32.totalorder %s19, 1
    %p168 = por %p166, %p167
    %p170 = scmp.ne.s32.totalorder %s155, %s169
    %p171 = scmp.eq.s32.totalorder %s19, 0
    %p172 = por %p170, %p171
    %s173 = ssub.s32 %s13, %s20
    %p174 = scmp.eq.s32.totalorder %s173, 0
    %s176 = sadd.s32 %s175, 1
    %s177 = scalar_select %p174, %s175, %s176
    %p180 = pneg %p174
    %p181 = scmp.eq.s32.totalorder %s13, 1
    %p182 = por %p180, %p181
    %p183 = scmp.ne.s32.totalorder %s175, %s178
    %p184 = scmp.eq.s32.totalorder %s13, 0
    %p185 = por %p183, %p184
    %p186 = scmp.ne.s32.totalorder %s175, %s178
    %p187 = scmp.eq.s32.totalorder %s18, 1
    %p188 = por %p186, %p187
    %p189 = scmp.ne.s32.totalorder %s178, %s179
    %p190 = scmp.eq.s32.totalorder %s18, 0
    %p191 = por %p189, %p190
    %p192 = scmp.ne.s32.totalorder %s178, %s179
    %p193 = scmp.eq.s32.totalorder %s19, 1
    %p194 = por %p192, %p193
    %p196 = scmp.ne.s32.totalorder %s179, %s195
    %p197 = scmp.eq.s32.totalorder %s19, 0
    %p198 = por %p196, %p197
    %p199 = scmp.le.s32.totalorder 1, %s13
    %p200 = scmp.lt.s32.totalorder %s13, 3
    %p201 = pnand %p199, %p200
    %p202 = pneg %p201
    // Predicated region
    $region9: #{triple_conv_forward.1} parent=5 // pred_check
      _
    $region10: #{triple_conv_forward.1} parent=5 // pred_check_branch
      %204 = sbr.rel (%p201) target = $region12
    $region11: #{triple_conv_forward.1} parent=5 // pred_region
      %s205 = ssub.s32 %s13, 1
      // Predicated region
      $region13: #{triple_conv_forward.1} parent=11 // pred_check
        %p206 = pneg %p60
      $region14: #{triple_conv_forward.1} parent=11 // pred_check_branch
        %208 = sbr.rel (%p206) target = $region16
      $region15: #{triple_conv_forward.1} parent=11 // pred_region
        _
      $region16: #{triple_conv_forward.1} parent=11 // pred_fallthru
        _
      // Predicated region
      $region17: #{triple_conv_forward.1} parent=11 // pred_check
        %p209 = pneg %p81
      $region18: #{triple_conv_forward.1} parent=11 // pred_check_branch
        %211 = sbr.rel (%p209) target = $region20
      $region19: #{triple_conv_forward.1} parent=11 // pred_region
        _
      $region20: #{triple_conv_forward.1} parent=11 // pred_fallthru
        _
      // Predicated region
      $region21: #{triple_conv_forward.1} parent=11 // pred_check
        %p212 = pneg %p102
      $region22: #{triple_conv_forward.1} parent=11 // pred_check_branch
        %214 = sbr.rel (%p212) target = $region24
      $region23: #{triple_conv_forward.1} parent=11 // pred_region
        _
      $region24: #{triple_conv_forward.1} parent=11 // pred_fallthru
        _
      // Predicated region
      $region25: #{triple_conv_forward.1} parent=11 // pred_check
        %p215 = pneg %p123
      $region26: #{triple_conv_forward.1} parent=11 // pred_check_branch
        %217 = sbr.rel (%p215) target = $region28
      $region27: #{triple_conv_forward.1} parent=11 // pred_region
        _
      $region28: #{triple_conv_forward.1} parent=11 // pred_fallthru
        _
      // Predicated region
      $region29: #{triple_conv_forward.1} parent=11 // pred_check
        %p218 = pneg %p144
      $region30: #{triple_conv_forward.1} parent=11 // pred_check_branch
        %220 = sbr.rel (%p218) target = $region32
      $region31: #{triple_conv_forward.1} parent=11 // pred_region
        _
      $region32: #{triple_conv_forward.1} parent=11 // pred_fallthru
        _
      // Predicated region
      $region33: #{triple_conv_forward.1} parent=11 // pred_check
        %p221 = pneg %p165
      $region34: #{triple_conv_forward.1} parent=11 // pred_check_branch
        %223 = sbr.rel (%p221) target = $region36
      $region35: #{triple_conv_forward.1} parent=11 // pred_region
        _
      $region36: #{triple_conv_forward.1} parent=11 // pred_fallthru
        _
    $region12: #{triple_conv_forward.1} parent=5 // pred_fallthru
      _
    %p224 = scmp.lt.s32.totalorder %s13, 2
    // Predicated region
    $region37: #{triple_conv_forward.1} parent=5 // pred_check
      %p225 = pneg %p224
    $region38: #{triple_conv_forward.1} parent=5 // pred_check_branch
      %227 = sbr.rel (%p225) target = $region40
    $region39: #{triple_conv_forward.1} parent=5 // pred_region
      // Predicated region
      $region41: #{triple_conv_forward.1} parent=39 // pred_check
        %p228 = pneg %p33
      $region42: #{triple_conv_forward.1} parent=39 // pred_check_branch
        %230 = sbr.rel (%p228) target = $region44
      $region43: #{triple_conv_forward.1} parent=39 // pred_region
        %p231 = scmp.lt.s32.totalorder %s13, 1
        %s232 = scalar_select %p231, %s13, 1
        %s233 = smul.addr %s232, 2
        %s234 = smul.addr %s233, 8
        %s235 = scalar_lea.vmem %s0, %s234
      $region44: #{triple_conv_forward.1} parent=39 // pred_fallthru
        _
    $region40: #{triple_conv_forward.1} parent=5 // pred_fallthru
      _
    %p236 = scmp.le.s32.totalorder 1, %s13
    %p237 = scmp.lt.s32.totalorder %s13, 3
    %p238 = pnand %p236, %p237
    %p239 = pneg %p238
    // Predicated region
    $region45: #{triple_conv_forward.1} parent=5 // pred_check
      _
    $region46: #{triple_conv_forward.1} parent=5 // pred_check_branch
      %241 = sbr.rel (%p238) target = $region48
    $region47: #{triple_conv_forward.1} parent=5 // pred_region
      %s242 = ssub.s32 %s13, 1
      %p243 = scmp.lt.s32.totalorder %s18, 1
      %s244 = scalar_select %p243, %s18, 1
      %s245 = smul.addr %s244, 2
      %s246 = smul.addr %s245, 8
      %s247 = scalar_lea.vmem %s0, %s246
      %p248 = pneg %p39
      %p249 = pneg %p36
      %p250 = pneg %p60
      %p251 = pneg %p57
      %p252 = pneg %p81
      %p253 = pneg %p78
      %p254 = pneg %p102
      %p255 = pneg %p99
      %p256 = pneg %p123
      %p257 = pneg %p120
      %p258 = pneg %p144
      %p259 = pneg %p141
      %p260 = pneg %p165
      %p261 = pneg %p162
      %p262 = pneg %p191
      %p263 = pneg %p188
      %p264 = scmp.lt.s32.totalorder %s18, 1
      %s265 = scalar_select %p264, %s18, 1
      %s266 = smul.addr %s265, 2
      %s267 = smul.addr %s266, 8
      %s268 = scalar_lea.vmem %s7, %s267
      %p269 = scmp.lt.s32.totalorder %s18, 1
      %s270 = scalar_select %p269, %s18, 1
      %s271 = smul.addr %s270, 2
      %s272 = smul.addr %s271, 8
      %s273 = scalar_lea.vmem %s0, %s272
      %p274 = scmp.lt.s32.totalorder %s18, 1
      %s275 = scalar_select %p274, %s18, 1
      %s276 = smul.addr %s275, 2
      %s277 = smul.addr %s276, 8
      %s278 = scalar_lea.vmem %s7, %s277
      %p279 = scmp.eq.s32.totalorder %s18, 0
      // Predicated region
      $region49: #{triple_conv_forward.1} parent=47 // pred_check
        %p280 = pneg %p279
      $region50: #{triple_conv_forward.1} parent=47 // pred_check_branch
        %282 = sbr.rel (%p280) target = $region52
      $region51: #{triple_conv_forward.1} parent=47 // pred_region
        %vm283 = vcmask 523264
        %284 = vst.msk [vmem:[#allocation2] sm:$0xff] %vm283, 0.0
        %285 = vst.msk [vmem:[#allocation2 + $0x8] sm:$0xff] %vm283, 0.0
        %vm286 = vcmask 517120
        %287 = vst.msk [vmem:[#allocation2 + $0x10] sm:$0x3] %vm286, 0.0
        %288 = vst [vmem:[#allocation3] sm:$0xff] 0.0
        %289 = vst [vmem:[#allocation3 + $0x8] sm:$0xff] 0.0
        %290 = vst [vmem:[#allocation3 + $0x10] sm:$0x3] 0.0
      $region52: #{triple_conv_forward.1} parent=47 // pred_fallthru
        _
      %v291 = vld [vmem:[%s273] sm:$0xff]
      %v292 = vld [vmem:[%s273 + $0x8] sm:$0xff]
      %vm293 = vcmask 523264
      %294 = vst.msk [vmem:[#allocation2 + $0x1] sm:$0xff] %vm293, %v291
      %295 = vst.msk [vmem:[#allocation2 + $0x9] sm:$0xff] %vm293, %v292
      %v296 = vld [vmem:[#allocation2] sm:$0xff]
      %v297 = vld [vmem:[#allocation2 + $0x8] sm:$0xff]
      %v298 = vld [vmem:[%s1] sm:$0xff]
      %v299 = vld [vmem:[%s1 + $0x8] sm:$0xff]
      %v300 = vld [vmem:[%s1 + $0x10] sm:$0xff]
      %v301 = vld [vmem:[%s1 + $0x18] sm:$0xff]
      %v302 = vld [vmem:[%s1 + $0x20] sm:$0xff]
      %v303 = vld [vmem:[%s1 + $0x28] sm:$0xff]
      %v304 = vld [vmem:[%s1 + $0x30] sm:$0xff]
      %v305 = vld [vmem:[%s1 + $0x38] sm:$0xff]
      %v306 = vld [vmem:[#allocation2 + $0x1] sm:$0xff]
      %v307 = vld [vmem:[#allocation2 + $0x9] sm:$0xff]
      %s308 = scalar_lea.vmem %s1, 64
      %v309 = vld [vmem:[%s308] sm:$0xff]
      %v310 = vld [vmem:[%s308 + $0x8] sm:$0xff]
      %v311 = vld [vmem:[%s308 + $0x10] sm:$0xff]
      %v312 = vld [vmem:[%s308 + $0x18] sm:$0xff]
      %v313 = vld [vmem:[%s308 + $0x20] sm:$0xff]
      %v314 = vld [vmem:[%s308 + $0x28] sm:$0xff]
      %v315 = vld [vmem:[%s308 + $0x30] sm:$0xff]
      %v316 = vld [vmem:[%s308 + $0x38] sm:$0xff]
      %v318 = vsel %vm293, %v306, 0
      %v321 = vsel %vm293, %v307, 0
      %323 = vmatprep.subr.mxu0 0.0
      %324 = vmatpush1.msra.mxu0 0.0
      %325 = vmatprep.subr.mxu0 0.0
      %326 = vmatpush1.msra.mxu0 0.0
      %327 = vmatprep.subr.mxu0 0.0
      %328 = vmatpush1.msra.mxu0 0.0
      %329 = vmatprep.subr.mxu0 0.0
      %330 = vmatpush1.msra.mxu0 0.0
      %331 = vmatprep.subr.mxu0 0.0
      %332 = vmatpush1.msra.mxu0 0.0
      %333 = vmatprep.subr.mxu0 0.0
      %334 = vmatpush1.msra.mxu0 0.0
      %335 = vmatprep.subr.mxu0 0.0
      %336 = vmatpush1.msra.mxu0 0.0
      %337 = vmatprep.subr.mxu0 0.0
      %338 = vmatpush1.msra.mxu0 0.0
      %339 = vmatprep.subr.mxu0 0.0
      %340 = vmatpush1.msra.mxu0 %v316
      %341 = vmatprep.subr.mxu0 0.0
      %342 = vmatpush1.msra.mxu0 %v315
      %343 = vmatprep.subr.mxu0 0.0
      %344 = vmatpush1.msra.mxu0 %v314
      %345 = vmatprep.subr.mxu0 0.0
      %346 = vmatpush1.msra.mxu0 %v313
      %347 = vmatprep.subr.mxu0 0.0
      %348 = vmatpush1.msra.mxu0 %v312
      %349 = vmatprep.subr.mxu0 0.0
      %350 = vmatpush1.msra.mxu0 %v311
      %351 = vmatprep.subr.mxu0 0.0
      %352 = vmatpush1.msra.mxu0 %v310
      %353 = vmatprep.subr.mxu0 0.0
      %354 = vmatpush1.msra.mxu0 %v309
      %355 = vmatprep.subr.mxu0 0.0
      %356 = vmatpush2.msra.mxu0 0.0
      %357 = vmatprep.subr.mxu0 0.0
      %358 = vmatpush2.msra.mxu0 0.0
      %359 = vmatprep.subr.mxu0 0.0
      %360 = vmatpush2.msra.mxu0 0.0
      %361 = vmatprep.subr.mxu0 0.0
      %362 = vmatpush2.msra.mxu0 0.0
      %363 = vmatprep.subr.mxu0 0.0
      %364 = vmatpush2.msra.mxu0 0.0
      %365 = vmatprep.subr.mxu0 0.0
      %366 = vmatpush2.msra.mxu0 0.0
      %367 = vmatprep.subr.mxu0 0.0
      %368 = vmatpush2.msra.mxu0 0.0
      %369 = vmatprep.subr.mxu0 0.0
      %370 = vmatpush2.msra.mxu0 0.0
      %371 = vmatprep.subr.mxu0 0.0
      %372 = vmatpush2.msra.mxu0 0.0
      %373 = vmatprep.subr.mxu0 0.0
      %374 = vmatpush2.msra.mxu0 0.0
      %375 = vmatprep.subr.mxu0 0.0
      %376 = vmatpush2.msra.mxu0 0.0
      %377 = vmatprep.subr.mxu0 0.0
      %378 = vmatpush2.msra.mxu0 0.0
      %379 = vmatprep.subr.mxu0 0.0
      %380 = vmatpush2.msra.mxu0 0.0
      %381 = vmatprep.subr.mxu0 0.0
      %382 = vmatpush2.msra.mxu0 0.0
      %383 = vmatprep.subr.mxu0 0.0
      %384 = vmatpush2.msra.mxu0 0.0
      %385 = vmatprep.subr.mxu0 0.0
      %386 = vmatpush2.msra.mxu0 0.0
      %387 = vmatprep.mubr.f32.mxu0 0.0
      %388 = vmatmul.mubr.f32.gmra.mxu0 %v318
      %v389 = vpop.f32.mrf.mxu0
      %v390 = vadd.f32 0.0, %v389
      %v391 = vpop.f32.mrf.mxu0
      %392 = vmatprep.mubr.f32.mxu0 0.0
      %393 = vmatmul.mubr.f32.gmra.mxu0 %v321
      %v394 = vpop.f32.mrf.mxu0
      %v395 = vadd.f32 0.0, %v394
      %v396 = vpop.f32.mrf.mxu0
      %397 = vdwg.mxu0
      %v399 = vsel %vm293, %v296, 0
      %v402 = vsel %vm293, %v297, 0
      %404 = vmatprep.subr.mxu0 0.0
      %405 = vmatpush1.msra.mxu0 0.0
      %406 = vmatprep.subr.mxu0 0.0
      %407 = vmatpush1.msra.mxu0 0.0
      %408 = vmatprep.subr.mxu0 0.0
      %409 = vmatpush1.msra.mxu0 0.0
      %410 = vmatprep.subr.mxu0 0.0
      %411 = vmatpush1.msra.mxu0 0.0
      %412 = vmatprep.subr.mxu0 0.0
      %413 = vmatpush1.msra.mxu0 0.0
      %414 = vmatprep.subr.mxu0 0.0
      %415 = vmatpush1.msra.mxu0 0.0
      %416 = vmatprep.subr.mxu0 0.0
      %417 = vmatpush1.msra.mxu0 0.0
      %418 = vmatprep.subr.mxu0 0.0
      %419 = vmatpush1.msra.mxu0 0.0
      %420 = vmatprep.subr.mxu0 0.0
      %421 = vmatpush1.msra.mxu0 %v305
      %422 = vmatprep.subr.mxu0 0.0
      %423 = vmatpush1.msra.mxu0 %v304
      %424 = vmatprep.subr.mxu0 0.0
      %425 = vmatpush1.msra.mxu0 %v303
      %426 = vmatprep.subr.mxu0 0.0
      %427 = vmatpush1.msra.mxu0 %v302
      %428 = vmatprep.subr.mxu0 0.0
      %429 = vmatpush1.msra.mxu0 %v301
      %430 = vmatprep.subr.mxu0 0.0
      %431 = vmatpush1.msra.mxu0 %v300
      %432 = vmatprep.subr.mxu0 0.0
      %433 = vmatpush1.msra.mxu0 %v299
      %434 = vmatprep.subr.mxu0 0.0
      %435 = vmatpush1.msra.mxu0 %v298
      %436 = vmatprep.subr.mxu0 0.0
      %437 = vmatpush2.msra.mxu0 0.0
      %438 = vmatprep.subr.mxu0 0.0
      %439 = vmatpush2.msra.mxu0 0.0
      %440 = vmatprep.subr.mxu0 0.0
      %441 = vmatpush2.msra.mxu0 0.0
      %442 = vmatprep.subr.mxu0 0.0
      %443 = vmatpush2.msra.mxu0 0.0
      %444 = vmatprep.subr.mxu0 0.0
      %445 = vmatpush2.msra.mxu0 0.0
      %446 = vmatprep.subr.mxu0 0.0
      %447 = vmatpush2.msra.mxu0 0.0
      %448 = vmatprep.subr.mxu0 0.0
      %449 = vmatpush2.msra.mxu0 0.0
      %450 = vmatprep.subr.mxu0 0.0
      %451 = vmatpush2.msra.mxu0 0.0
      %452 = vmatprep.subr.mxu0 0.0
      %453 = vmatpush2.msra.mxu0 0.0
      %454 = vmatprep.subr.mxu0 0.0
      %455 = vmatpush2.msra.mxu0 0.0
      %456 = vmatprep.subr.mxu0 0.0
      %457 = vmatpush2.msra.mxu0 0.0
      %458 = vmatprep.subr.mxu0 0.0
      %459 = vmatpush2.msra.mxu0 0.0
      %460 = vmatprep.subr.mxu0 0.0
      %461 = vmatpush2.msra.mxu0 0.0
      %462 = vmatprep.subr.mxu0 0.0
      %463 = vmatpush2.msra.mxu0 0.0
      %464 = vmatprep.subr.mxu0 0.0
      %465 = vmatpush2.msra.mxu0 0.0
      %466 = vmatprep.subr.mxu0 0.0
      %467 = vmatpush2.msra.mxu0 0.0
      %468 = vmatprep.mubr.f32.mxu0 0.0
      %469 = vmatmul.mubr.f32.gmra.mxu0 %v399
      %v470 = vpop.f32.mrf.mxu0
      %v471 = vadd.f32 %v390, %v470
      %v472 = vpop.f32.mrf.mxu0
      %473 = vmatprep.mubr.f32.mxu0 0.0
      %474 = vmatmul.mubr.f32.gmra.mxu0 %v402
      %v475 = vpop.f32.mrf.mxu0
      %v476 = vadd.f32 %v395, %v475
      %v477 = vpop.f32.mrf.mxu0
      %478 = vdwg.mxu0
      %v479 = vld [vmem:[#allocation2 + $0x2] sm:$0xff]
      %v480 = vld [vmem:[#allocation2 + $0xa] sm:$0xff]
      %s481 = scalar_lea.vmem %s1, 128
      %v482 = vld [vmem:[%s481] sm:$0xff]
      %v483 = vld [vmem:[%s481 + $0x8] sm:$0xff]
      %v484 = vld [vmem:[%s481 + $0x10] sm:$0xff]
      %v485 = vld [vmem:[%s481 + $0x18] sm:$0xff]
      %v486 = vld [vmem:[%s481 + $0x20] sm:$0xff]
      %v487 = vld [vmem:[%s481 + $0x28] sm:$0xff]
      %v488 = vld [vmem:[%s481 + $0x30] sm:$0xff]
      %v489 = vld [vmem:[%s481 + $0x38] sm:$0xff]
      %v491 = vsel %vm293, %v479, 0
      %v494 = vsel %vm293, %v480, 0
      %496 = vmatprep.subr.mxu0 0.0
      %497 = vmatpush1.msra.mxu0 0.0
      %498 = vmatprep.subr.mxu0 0.0
      %499 = vmatpush1.msra.mxu0 0.0
      %500 = vmatprep.subr.mxu0 0.0
      %501 = vmatpush1.msra.mxu0 0.0
      %502 = vmatprep.subr.mxu0 0.0
      %503 = vmatpush1.msra.mxu0 0.0
      %504 = vmatprep.subr.mxu0 0.0
      %505 = vmatpush1.msra.mxu0 0.0
      %506 = vmatprep.subr.mxu0 0.0
      %507 = vmatpush1.msra.mxu0 0.0
      %508 = vmatprep.subr.mxu0 0.0
      %509 = vmatpush1.msra.mxu0 0.0
      %510 = vmatprep.subr.mxu0 0.0
      %511 = vmatpush1.msra.mxu0 0.0
      %512 = vmatprep.subr.mxu0 0.0
      %513 = vmatpush1.msra.mxu0 %v489
      %514 = vmatprep.subr.mxu0 0.0
      %515 = vmatpush1.msra.mxu0 %v488
      %516 = vmatprep.subr.mxu0 0.0
      %517 = vmatpush1.msra.mxu0 %v487
      %518 = vmatprep.subr.mxu0 0.0
      %519 = vmatpush1.msra.mxu0 %v486
      %520 = vmatprep.subr.mxu0 0.0
      %521 = vmatpush1.msra.mxu0 %v485
      %522 = vmatprep.subr.mxu0 0.0
      %523 = vmatpush1.msra.mxu0 %v484
      %524 = vmatprep.subr.mxu0 0.0
      %525 = vmatpush1.msra.mxu0 %v483
      %526 = vmatprep.subr.mxu0 0.0
      %527 = vmatpush1.msra.mxu0 %v482
      %528 = vmatprep.subr.mxu0 0.0
      %529 = vmatpush2.msra.mxu0 0.0
      %530 = vmatprep.subr.mxu0 0.0
      %531 = vmatpush2.msra.mxu0 0.0
      %532 = vmatprep.subr.mxu0 0.0
      %533 = vmatpush2.msra.mxu0 0.0
      %534 = vmatprep.subr.mxu0 0.0
      %535 = vmatpush2.msra.mxu0 0.0
      %536 = vmatprep.subr.mxu0 0.0
      %537 = vmatpush2.msra.mxu0 0.0
      %538 = vmatprep.subr.mxu0 0.0
      %539 = vmatpush2.msra.mxu0 0.0
      %540 = vmatprep.subr.mxu0 0.0
      %541 = vmatpush2.msra.mxu0 0.0
      %542 = vmatprep.subr.mxu0 0.0
      %543 = vmatpush2.msra.mxu0 0.0
      %544 = vmatprep.subr.mxu0 0.0
      %545 = vmatpush2.msra.mxu0 0.0
      %546 = vmatprep.subr.mxu0 0.0
      %547 = vmatpush2.msra.mxu0 0.0
      %548 = vmatprep.subr.mxu0 0.0
      %549 = vmatpush2.msra.mxu0 0.0
      %550 = vmatprep.subr.mxu0 0.0
      %551 = vmatpush2.msra.mxu0 0.0
      %552 = vmatprep.subr.mxu0 0.0
      %553 = vmatpush2.msra.mxu0 0.0
      %554 = vmatprep.subr.mxu0 0.0
      %555 = vmatpush2.msra.mxu0 0.0
      %556 = vmatprep.subr.mxu0 0.0
      %557 = vmatpush2.msra.mxu0 0.0
      %558 = vmatprep.subr.mxu0 0.0
      %559 = vmatpush2.msra.mxu0 0.0
      %560 = vmatprep.mubr.f32.mxu0 0.0
      %561 = vmatmul.mubr.f32.gmra.mxu0 %v491
      %v562 = vpop.f32.mrf.mxu0
      %v563 = vadd.f32 0.0, %v562
      %v564 = vpop.f32.mrf.mxu0
      %565 = vmatprep.mubr.f32.mxu0 0.0
      %566 = vmatmul.mubr.f32.gmra.mxu0 %v494
      %v567 = vpop.f32.mrf.mxu0
      %v568 = vadd.f32 0.0, %v567
      %v569 = vpop.f32.mrf.mxu0
      %570 = vdwg.mxu0
      %v571 = vadd.f32 %v471, %v563
      %v572 = vadd.f32 %v476, %v568
      %v573 = vld [vmem:[%s2] sm:$0x1]
      %v575 = vlaneseq
      %v576 = vshrl.u32 %v575, 7
      %v577 = vsub.s32 0, %v576
      %v578 = vrot.slane %v573, %v577
      %v580 = vadd.f32 %v571, %v578
      %v581 = vadd.f32 %v572, %v578
      %v582 = vmax.f32 %v580, 0.0
      %v583 = vmax.f32 %v581, 0.0
      %584 = vst [vmem:[#allocation3 + $0x1] sm:$0xff] %v582
      %585 = vst [vmem:[#allocation3 + $0x9] sm:$0xff] %v583
      %v586 = vld [vmem:[#allocation3] sm:$0xff]
      %v587 = vld [vmem:[#allocation3 + $0x8] sm:$0xff]
      %v588 = vld [vmem:[%s3] sm:$0xff]
      %v589 = vld [vmem:[%s3 + $0x8] sm:$0xff]
      %v590 = vld [vmem:[%s3 + $0x10] sm:$0xff]
      %v591 = vld [vmem:[%s3 + $0x18] sm:$0xff]
      %v592 = vld [vmem:[%s3 + $0x20] sm:$0xff]
      %v593 = vld [vmem:[%s3 + $0x28] sm:$0xff]
      %v594 = vld [vmem:[%s3 + $0x30] sm:$0xff]
      %v595 = vld [vmem:[%s3 + $0x38] sm:$0xff]
      %v596 = vld [vmem:[%s3 + $0x40] sm:$0xff]
      %v597 = vld [vmem:[%s3 + $0x48] sm:$0xff]
      %v598 = vld [vmem:[%s3 + $0x50] sm:$0xff]
      %v599 = vld [vmem:[%s3 + $0x58] sm:$0xff]
      %v600 = vld [vmem:[%s3 + $0x60] sm:$0xff]
      %v601 = vld [vmem:[%s3 + $0x68] sm:$0xff]
      %v602 = vld [vmem:[%s3 + $0x70] sm:$0xff]
      %v603 = vld [vmem:[%s3 + $0x78] sm:$0xff]
      %v604 = vld [vmem:[#allocation3 + $0x1] sm:$0xff]
      %v605 = vld [vmem:[#allocation3 + $0x9] sm:$0xff]
      %s606 = scalar_lea.vmem %s3, 128
      %v607 = vld [vmem:[%s606] sm:$0xff]
      %v608 = vld [vmem:[%s606 + $0x8] sm:$0xff]
      %v609 = vld [vmem:[%s606 + $0x10] sm:$0xff]
      %v610 = vld [vmem:[%s606 + $0x18] sm:$0xff]
      %v611 = vld [vmem:[%s606 + $0x20] sm:$0xff]
      %v612 = vld [vmem:[%s606 + $0x28] sm:$0xff]
      %v613 = vld [vmem:[%s606 + $0x30] sm:$0xff]
      %v614 = vld [vmem:[%s606 + $0x38] sm:$0xff]
      %v615 = vld [vmem:[%s606 + $0x40] sm:$0xff]
      %v616 = vld [vmem:[%s606 + $0x48] sm:$0xff]
      %v617 = vld [vmem:[%s606 + $0x50] sm:$0xff]
      %v618 = vld [vmem:[%s606 + $0x58] sm:$0xff]
      %v619 = vld [vmem:[%s606 + $0x60] sm:$0xff]
      %v620 = vld [vmem:[%s606 + $0x68] sm:$0xff]
      %v621 = vld [vmem:[%s606 + $0x70] sm:$0xff]
      %v622 = vld [vmem:[%s606 + $0x78] sm:$0xff]
      %623 = vmatprep.subr.mxu0 0.0
      %624 = vmatpush1.msra.mxu0 %v622
      %625 = vmatprep.subr.mxu0 0.0
      %626 = vmatpush1.msra.mxu0 %v621
      %627 = vmatprep.subr.mxu0 0.0
      %628 = vmatpush1.msra.mxu0 %v620
      %629 = vmatprep.subr.mxu0 0.0
      %630 = vmatpush1.msra.mxu0 %v619
      %631 = vmatprep.subr.mxu0 0.0
      %632 = vmatpush1.msra.mxu0 %v618
      %633 = vmatprep.subr.mxu0 0.0
      %634 = vmatpush1.msra.mxu0 %v617
      %635 = vmatprep.subr.mxu0 0.0
      %636 = vmatpush1.msra.mxu0 %v616
      %637 = vmatprep.subr.mxu0 0.0
      %638 = vmatpush1.msra.mxu0 %v615
      %639 = vmatprep.subr.mxu0 0.0
      %640 = vmatpush1.msra.mxu0 %v614
      %641 = vmatprep.subr.mxu0 0.0
      %642 = vmatpush1.msra.mxu0 %v613
      %643 = vmatprep.subr.mxu0 0.0
      %644 = vmatpush1.msra.mxu0 %v612
      %645 = vmatprep.subr.mxu0 0.0
      %646 = vmatpush1.msra.mxu0 %v611
      %647 = vmatprep.subr.mxu0 0.0
      %648 = vmatpush1.msra.mxu0 %v610
      %649 = vmatprep.subr.mxu0 0.0
      %650 = vmatpush1.msra.mxu0 %v609
      %651 = vmatprep.subr.mxu0 0.0
      %652 = vmatpush1.msra.mxu0 %v608
      %653 = vmatprep.subr.mxu0 0.0
      %654 = vmatpush1.msra.mxu0 %v607
      %655 = vmatprep.subr.mxu0 0.0
      %656 = vmatpush2.msra.mxu0 0.0
      %657 = vmatprep.subr.mxu0 0.0
      %658 = vmatpush2.msra.mxu0 0.0
      %659 = vmatprep.subr.mxu0 0.0
      %660 = vmatpush2.msra.mxu0 0.0
      %661 = vmatprep.subr.mxu0 0.0
      %662 = vmatpush2.msra.mxu0 0.0
      %663 = vmatprep.subr.mxu0 0.0
      %664 = vmatpush2.msra.mxu0 0.0
      %665 = vmatprep.subr.mxu0 0.0
      %666 = vmatpush2.msra.mxu0 0.0
      %667 = vmatprep.subr.mxu0 0.0
      %668 = vmatpush2.msra.mxu0 0.0
      %669 = vmatprep.subr.mxu0 0.0
      %670 = vmatpush2.msra.mxu0 0.0
      %671 = vmatprep.subr.mxu0 0.0
      %672 = vmatpush2.msra.mxu0 0.0
      %673 = vmatprep.subr.mxu0 0.0
      %674 = vmatpush2.msra.mxu0 0.0
      %675 = vmatprep.subr.mxu0 0.0
      %676 = vmatpush2.msra.mxu0 0.0
      %677 = vmatprep.subr.mxu0 0.0
      %678 = vmatpush2.msra.mxu0 0.0
      %679 = vmatprep.subr.mxu0 0.0
      %680 = vmatpush2.msra.mxu0 0.0
      %681 = vmatprep.subr.mxu0 0.0
      %682 = vmatpush2.msra.mxu0 0.0
      %683 = vmatprep.subr.mxu0 0.0
      %684 = vmatpush2.msra.mxu0 0.0
      %685 = vmatprep.subr.mxu0 0.0
      %686 = vmatpush2.msra.mxu0 0.0
      %687 = vmatprep.mubr.f32.mxu0 0.0
      %688 = vmatmul.mubr.f32.gmra.mxu0 %v604
      %v689 = vpop.f32.mrf.mxu0
      %v690 = vadd.f32 0.0, %v689
      %v691 = vpop.f32.mrf.mxu0
      %692 = vmatprep.mubr.f32.mxu0 0.0
      %693 = vmatmul.mubr.f32.gmra.mxu0 %v605
      %v694 = vpop.f32.mrf.mxu0
      %v695 = vadd.f32 0.0, %v694
      %v696 = vpop.f32.mrf.mxu0
      %697 = vdwg.mxu0
      %698 = vmatprep.subr.mxu0 0.0
      %699 = vmatpush1.msra.mxu0 %v603
      %700 = vmatprep.subr.mxu0 0.0
      %701 = vmatpush1.msra.mxu0 %v602
      %702 = vmatprep.subr.mxu0 0.0
      %703 = vmatpush1.msra.mxu0 %v601
      %704 = vmatprep.subr.mxu0 0.0
      %705 = vmatpush1.msra.mxu0 %v600
      %706 = vmatprep.subr.mxu0 0.0
      %707 = vmatpush1.msra.mxu0 %v599
      %708 = vmatprep.subr.mxu0 0.0
      %709 = vmatpush1.msra.mxu0 %v598
      %710 = vmatprep.subr.mxu0 0.0
      %711 = vmatpush1.msra.mxu0 %v597
      %712 = vmatprep.subr.mxu0 0.0
      %713 = vmatpush1.msra.mxu0 %v596
      %714 = vmatprep.subr.mxu0 0.0
      %715 = vmatpush1.msra.mxu0 %v595
      %716 = vmatprep.subr.mxu0 0.0
      %717 = vmatpush1.msra.mxu0 %v594
      %718 = vmatprep.subr.mxu0 0.0
      %719 = vmatpush1.msra.mxu0 %v593
      %720 = vmatprep.subr.mxu0 0.0
      %721 = vmatpush1.msra.mxu0 %v592
      %722 = vmatprep.subr.mxu0 0.0
      %723 = vmatpush1.msra.mxu0 %v591
      %724 = vmatprep.subr.mxu0 0.0
      %725 = vmatpush1.msra.mxu0 %v590
      %726 = vmatprep.subr.mxu0 0.0
      %727 = vmatpush1.msra.mxu0 %v589
      %728 = vmatprep.subr.mxu0 0.0
      %729 = vmatpush1.msra.mxu0 %v588
      %730 = vmatprep.subr.mxu0 0.0
      %731 = vmatpush2.msra.mxu0 0.0
      %732 = vmatprep.subr.mxu0 0.0
      %733 = vmatpush2.msra.mxu0 0.0
      %734 = vmatprep.subr.mxu0 0.0
      %735 = vmatpush2.msra.mxu0 0.0
      %736 = vmatprep.subr.mxu0 0.0
      %737 = vmatpush2.msra.mxu0 0.0
      %738 = vmatprep.subr.mxu0 0.0
      %739 = vmatpush2.msra.mxu0 0.0
      %740 = vmatprep.subr.mxu0 0.0
      %741 = vmatpush2.msra.mxu0 0.0
      %742 = vmatprep.subr.mxu0 0.0
      %743 = vmatpush2.msra.mxu0 0.0
      %744 = vmatprep.subr.mxu0 0.0
      %745 = vmatpush2.msra.mxu0 0.0
      %746 = vmatprep.subr.mxu0 0.0
      %747 = vmatpush2.msra.mxu0 0.0
      %748 = vmatprep.subr.mxu0 0.0
      %749 = vmatpush2.msra.mxu0 0.0
      %750 = vmatprep.subr.mxu0 0.0
      %751 = vmatpush2.msra.mxu0 0.0
      %752 = vmatprep.subr.mxu0 0.0
      %753 = vmatpush2.msra.mxu0 0.0
      %754 = vmatprep.subr.mxu0 0.0
      %755 = vmatpush2.msra.mxu0 0.0
      %756 = vmatprep.subr.mxu0 0.0
      %757 = vmatpush2.msra.mxu0 0.0
      %758 = vmatprep.subr.mxu0 0.0
      %759 = vmatpush2.msra.mxu0 0.0
      %760 = vmatprep.subr.mxu0 0.0
      %761 = vmatpush2.msra.mxu0 0.0
      %762 = vmatprep.mubr.f32.mxu0 0.0
      %763 = vmatmul.mubr.f32.gmra.mxu0 %v586
      %v764 = vpop.f32.mrf.mxu0
      %v765 = vadd.f32 %v690, %v764
      %v766 = vpop.f32.mrf.mxu0
      %767 = vmatprep.mubr.f32.mxu0 0.0
      %768 = vmatmul.mubr.f32.gmra.mxu0 %v587
      %v769 = vpop.f32.mrf.mxu0
      %v770 = vadd.f32 %v695, %v769
      %v771 = vpop.f32.mrf.mxu0
      %772 = vdwg.mxu0
      %v773 = vld [vmem:[#allocation3 + $0x2] sm:$0xff]
      %v774 = vld [vmem:[#allocation3 + $0xa] sm:$0xff]
      %s775 = scalar_lea.vmem %s3, 256
      %v776 = vld [vmem:[%s775] sm:$0xff]
      %v777 = vld [vmem:[%s775 + $0x8] sm:$0xff]
      %v778 = vld [vmem:[%s775 + $0x10] sm:$0xff]
      %v779 = vld [vmem:[%s775 + $0x18] sm:$0xff]
      %v780 = vld [vmem:[%s775 + $0x20] sm:$0xff]
      %v781 = vld [vmem:[%s775 + $0x28] sm:$0xff]
      %v782 = vld [vmem:[%s775 + $0x30] sm:$0xff]
      %v783 = vld [vmem:[%s775 + $0x38] sm:$0xff]
      %v784 = vld [vmem:[%s775 + $0x40] sm:$0xff]
      %v785 = vld [vmem:[%s775 + $0x48] sm:$0xff]
      %v786 = vld [vmem:[%s775 + $0x50] sm:$0xff]
      %v787 = vld [vmem:[%s775 + $0x58] sm:$0xff]
      %v788 = vld [vmem:[%s775 + $0x60] sm:$0xff]
      %v789 = vld [vmem:[%s775 + $0x68] sm:$0xff]
      %v790 = vld [vmem:[%s775 + $0x70] sm:$0xff]
      %v791 = vld [vmem:[%s775 + $0x78] sm:$0xff]
      %792 = vmatprep.subr.mxu0 0.0
      %793 = vmatpush1.msra.mxu0 %v791
      %794 = vmatprep.subr.mxu0 0.0
      %795 = vmatpush1.msra.mxu0 %v790
      %796 = vmatprep.subr.mxu0 0.0
      %797 = vmatpush1.msra.mxu0 %v789
      %798 = vmatprep.subr.mxu0 0.0
      %799 = vmatpush1.msra.mxu0 %v788
      %800 = vmatprep.subr.mxu0 0.0
      %801 = vmatpush1.msra.mxu0 %v787
      %802 = vmatprep.subr.mxu0 0.0
      %803 = vmatpush1.msra.mxu0 %v786
      %804 = vmatprep.subr.mxu0 0.0
      %805 = vmatpush1.msra.mxu0 %v785
      %806 = vmatprep.subr.mxu0 0.0
      %807 = vmatpush1.msra.mxu0 %v784
      %808 = vmatprep.subr.mxu0 0.0
      %809 = vmatpush1.msra.mxu0 %v783
      %810 = vmatprep.subr.mxu0 0.0
      %811 = vmatpush1.msra.mxu0 %v782
      %812 = vmatprep.subr.mxu0 0.0
      %813 = vmatpush1.msra.mxu0 %v781
      %814 = vmatprep.subr.mxu0 0.0
      %815 = vmatpush1.msra.mxu0 %v780
      %816 = vmatprep.subr.mxu0 0.0
      %817 = vmatpush1.msra.mxu0 %v779
      %818 = vmatprep.subr.mxu0 0.0
      %819 = vmatpush1.msra.mxu0 %v778
      %820 = vmatprep.subr.mxu0 0.0
      %821 = vmatpush1.msra.mxu0 %v777
      %822 = vmatprep.subr.mxu0 0.0
      %823 = vmatpush1.msra.mxu0 %v776
      %824 = vmatprep.subr.mxu0 0.0
      %825 = vmatpush2.msra.mxu0 0.0
      %826 = vmatprep.subr.mxu0 0.0
      %827 = vmatpush2.msra.mxu0 0.0
      %828 = vmatprep.subr.mxu0 0.0
      %829 = vmatpush2.msra.mxu0 0.0
      %830 = vmatprep.subr.mxu0 0.0
      %831 = vmatpush2.msra.mxu0 0.0
      %832 = vmatprep.subr.mxu0 0.0
      %833 = vmatpush2.msra.mxu0 0.0
      %834 = vmatprep.subr.mxu0 0.0
      %835 = vmatpush2.msra.mxu0 0.0
      %836 = vmatprep.subr.mxu0 0.0
      %837 = vmatpush2.msra.mxu0 0.0
      %838 = vmatprep.subr.mxu0 0.0
      %839 = vmatpush2.msra.mxu0 0.0
      %840 = vmatprep.subr.mxu0 0.0
      %841 = vmatpush2.msra.mxu0 0.0
      %842 = vmatprep.subr.mxu0 0.0
      %843 = vmatpush2.msra.mxu0 0.0
      %844 = vmatprep.subr.mxu0 0.0
      %845 = vmatpush2.msra.mxu0 0.0
      %846 = vmatprep.subr.mxu0 0.0
      %847 = vmatpush2.msra.mxu0 0.0
      %848 = vmatprep.subr.mxu0 0.0
      %849 = vmatpush2.msra.mxu0 0.0
      %850 = vmatprep.subr.mxu0 0.0
      %851 = vmatpush2.msra.mxu0 0.0
      %852 = vmatprep.subr.mxu0 0.0
      %853 = vmatpush2.msra.mxu0 0.0
      %854 = vmatprep.subr.mxu0 0.0
      %855 = vmatpush2.msra.mxu0 0.0
      %856 = vmatprep.mubr.f32.mxu0 0.0
      %857 = vmatmul.mubr.f32.gmra.mxu0 %v773
      %v858 = vpop.f32.mrf.mxu0
      %v859 = vadd.f32 0.0, %v858
      %v860 = vpop.f32.mrf.mxu0
      %861 = vmatprep.mubr.f32.mxu0 0.0
      %862 = vmatmul.mubr.f32.gmra.mxu0 %v774
      %v863 = vpop.f32.mrf.mxu0
      %v864 = vadd.f32 0.0, %v863
      %v865 = vpop.f32.mrf.mxu0
      %866 = vdwg.mxu0
      %v867 = vadd.f32 %v765, %v859
      %v868 = vadd.f32 %v770, %v864
      %v869 = vld [vmem:[%s4] sm:$0x1]
      %v871 = vlaneseq
      %v872 = vshrl.u32 %v871, 7
      %v873 = vsub.s32 0, %v872
      %v874 = vrot.slane %v869, %v873
      %v876 = vadd.f32 %v867, %v874
      %v877 = vadd.f32 %v868, %v874
      %v878 = vmax.f32 %v876, 0.0
      %v879 = vmax.f32 %v877, 0.0
      %880 = vst [vmem:[#allocation3 + $0x1] sm:$0xff] %v878
      %881 = vst [vmem:[#allocation3 + $0x9] sm:$0xff] %v879
      %v882 = vld [vmem:[#allocation3] sm:$0xff]
      %v883 = vld [vmem:[#allocation3 + $0x8] sm:$0xff]
      %v884 = vld [vmem:[%s5] sm:$0xff]
      %v885 = vld [vmem:[%s5 + $0x8] sm:$0xff]
      %v886 = vld [vmem:[%s5 + $0x10] sm:$0xff]
      %v887 = vld [vmem:[%s5 + $0x18] sm:$0xff]
      %v888 = vld [vmem:[%s5 + $0x20] sm:$0xff]
      %v889 = vld [vmem:[%s5 + $0x28] sm:$0xff]
      %v890 = vld [vmem:[%s5 + $0x30] sm:$0xff]
      %v891 = vld [vmem:[%s5 + $0x38] sm:$0xff]
      %v892 = vld [vmem:[%s5 + $0x40] sm:$0xff]
      %v893 = vld [vmem:[%s5 + $0x48] sm:$0xff]
      %v894 = vld [vmem:[%s5 + $0x50] sm:$0xff]
      %v895 = vld [vmem:[%s5 + $0x58] sm:$0xff]
      %v896 = vld [vmem:[%s5 + $0x60] sm:$0xff]
      %v897 = vld [vmem:[%s5 + $0x68] sm:$0xff]
      %v898 = vld [vmem:[%s5 + $0x70] sm:$0xff]
      %v899 = vld [vmem:[%s5 + $0x78] sm:$0xff]
      %v900 = vld [vmem:[#allocation3 + $0x1] sm:$0xff]
      %v901 = vld [vmem:[#allocation3 + $0x9] sm:$0xff]
      %s902 = scalar_lea.vmem %s5, 128
      %v903 = vld [vmem:[%s902] sm:$0xff]
      %v904 = vld [vmem:[%s902 + $0x8] sm:$0xff]
      %v905 = vld [vmem:[%s902 + $0x10] sm:$0xff]
      %v906 = vld [vmem:[%s902 + $0x18] sm:$0xff]
      %v907 = vld [vmem:[%s902 + $0x20] sm:$0xff]
      %v908 = vld [vmem:[%s902 + $0x28] sm:$0xff]
      %v909 = vld [vmem:[%s902 + $0x30] sm:$0xff]
      %v910 = vld [vmem:[%s902 + $0x38] sm:$0xff]
      %v911 = vld [vmem:[%s902 + $0x40] sm:$0xff]
      %v912 = vld [vmem:[%s902 + $0x48] sm:$0xff]
      %v913 = vld [vmem:[%s902 + $0x50] sm:$0xff]
      %v914 = vld [vmem:[%s902 + $0x58] sm:$0xff]
      %v915 = vld [vmem:[%s902 + $0x60] sm:$0xff]
      %v916 = vld [vmem:[%s902 + $0x68] sm:$0xff]
      %v917 = vld [vmem:[%s902 + $0x70] sm:$0xff]
      %v918 = vld [vmem:[%s902 + $0x78] sm:$0xff]
      %919 = vmatprep.subr.mxu0 0.0
      %920 = vmatpush1.msra.mxu0 %v918
      %921 = vmatprep.subr.mxu0 0.0
      %922 = vmatpush1.msra.mxu0 %v917
      %923 = vmatprep.subr.mxu0 0.0
      %924 = vmatpush1.msra.mxu0 %v916
      %925 = vmatprep.subr.mxu0 0.0
      %926 = vmatpush1.msra.mxu0 %v915
      %927 = vmatprep.subr.mxu0 0.0
      %928 = vmatpush1.msra.mxu0 %v914
      %929 = vmatprep.subr.mxu0 0.0
      %930 = vmatpush1.msra.mxu0 %v913
      %931 = vmatprep.subr.mxu0 0.0
      %932 = vmatpush1.msra.mxu0 %v912
      %933 = vmatprep.subr.mxu0 0.0
      %934 = vmatpush1.msra.mxu0 %v911
      %935 = vmatprep.subr.mxu0 0.0
      %936 = vmatpush1.msra.mxu0 %v910
      %937 = vmatprep.subr.mxu0 0.0
      %938 = vmatpush1.msra.mxu0 %v909
      %939 = vmatprep.subr.mxu0 0.0
      %940 = vmatpush1.msra.mxu0 %v908
      %941 = vmatprep.subr.mxu0 0.0
      %942 = vmatpush1.msra.mxu0 %v907
      %943 = vmatprep.subr.mxu0 0.0
      %944 = vmatpush1.msra.mxu0 %v906
      %945 = vmatprep.subr.mxu0 0.0
      %946 = vmatpush1.msra.mxu0 %v905
      %947 = vmatprep.subr.mxu0 0.0
      %948 = vmatpush1.msra.mxu0 %v904
      %949 = vmatprep.subr.mxu0 0.0
      %950 = vmatpush1.msra.mxu0 %v903
      %951 = vmatprep.subr.mxu0 0.0
      %952 = vmatpush2.msra.mxu0 0.0
      %953 = vmatprep.subr.mxu0 0.0
      %954 = vmatpush2.msra.mxu0 0.0
      %955 = vmatprep.subr.mxu0 0.0
      %956 = vmatpush2.msra.mxu0 0.0
      %957 = vmatprep.subr.mxu0 0.0
      %958 = vmatpush2.msra.mxu0 0.0
      %959 = vmatprep.subr.mxu0 0.0
      %960 = vmatpush2.msra.mxu0 0.0
      %961 = vmatprep.subr.mxu0 0.0
      %962 = vmatpush2.msra.mxu0 0.0
      %963 = vmatprep.subr.mxu0 0.0
      %964 = vmatpush2.msra.mxu0 0.0
      %965 = vmatprep.subr.mxu0 0.0
      %966 = vmatpush2.msra.mxu0 0.0
      %967 = vmatprep.subr.mxu0 0.0
      %968 = vmatpush2.msra.mxu0 0.0
      %969 = vmatprep.subr.mxu0 0.0
      %970 = vmatpush2.msra.mxu0 0.0
      %971 = vmatprep.subr.mxu0 0.0
      %972 = vmatpush2.msra.mxu0 0.0
      %973 = vmatprep.subr.mxu0 0.0
      %974 = vmatpush2.msra.mxu0 0.0
      %975 = vmatprep.subr.mxu0 0.0
      %976 = vmatpush2.msra.mxu0 0.0
      %977 = vmatprep.subr.mxu0 0.0
      %978 = vmatpush2.msra.mxu0 0.0
      %979 = vmatprep.subr.mxu0 0.0
      %980 = vmatpush2.msra.mxu0 0.0
      %981 = vmatprep.subr.mxu0 0.0
      %982 = vmatpush2.msra.mxu0 0.0
      %983 = vmatprep.mubr.f32.mxu0 0.0
      %984 = vmatmul.mubr.f32.gmra.mxu0 %v900
      %v985 = vpop.f32.mrf.mxu0
      %v986 = vadd.f32 0.0, %v985
      %v987 = vpop.f32.mrf.mxu0
      %988 = vmatprep.mubr.f32.mxu0 0.0
      %989 = vmatmul.mubr.f32.gmra.mxu0 %v901
      %v990 = vpop.f32.mrf.mxu0
      %v991 = vadd.f32 0.0, %v990
      %v992 = vpop.f32.mrf.mxu0
      %993 = vdwg.mxu0
      %994 = vmatprep.subr.mxu0 0.0
      %995 = vmatpush1.msra.mxu0 %v899
      %996 = vmatprep.subr.mxu0 0.0
      %997 = vmatpush1.msra.mxu0 %v898
      %998 = vmatprep.subr.mxu0 0.0
      %999 = vmatpush1.msra.mxu0 %v897
      %1000 = vmatprep.subr.mxu0 0.0
      %1001 = vmatpush1.msra.mxu0 %v896
      %1002 = vmatprep.subr.mxu0 0.0
      %1003 = vmatpush1.msra.mxu0 %v895
      %1004 = vmatprep.subr.mxu0 0.0
      %1005 = vmatpush1.msra.mxu0 %v894
      %1006 = vmatprep.subr.mxu0 0.0
      %1007 = vmatpush1.msra.mxu0 %v893
      %1008 = vmatprep.subr.mxu0 0.0
      %1009 = vmatpush1.msra.mxu0 %v892
      %1010 = vmatprep.subr.mxu0 0.0
      %1011 = vmatpush1.msra.mxu0 %v891
      %1012 = vmatprep.subr.mxu0 0.0
      %1013 = vmatpush1.msra.mxu0 %v890
      %1014 = vmatprep.subr.mxu0 0.0
      %1015 = vmatpush1.msra.mxu0 %v889
      %1016 = vmatprep.subr.mxu0 0.0
      %1017 = vmatpush1.msra.mxu0 %v888
      %1018 = vmatprep.subr.mxu0 0.0
      %1019 = vmatpush1.msra.mxu0 %v887
      %1020 = vmatprep.subr.mxu0 0.0
      %1021 = vmatpush1.msra.mxu0 %v886
      %1022 = vmatprep.subr.mxu0 0.0
      %1023 = vmatpush1.msra.mxu0 %v885
      %1024 = vmatprep.subr.mxu0 0.0
      %1025 = vmatpush1.msra.mxu0 %v884
      %1026 = vmatprep.subr.mxu0 0.0
      %1027 = vmatpush2.msra.mxu0 0.0
      %1028 = vmatprep.subr.mxu0 0.0
      %1029 = vmatpush2.msra.mxu0 0.0
      %1030 = vmatprep.subr.mxu0 0.0
      %1031 = vmatpush2.msra.mxu0 0.0
      %1032 = vmatprep.subr.mxu0 0.0
      %1033 = vmatpush2.msra.mxu0 0.0
      %1034 = vmatprep.subr.mxu0 0.0
      %1035 = vmatpush2.msra.mxu0 0.0
      %1036 = vmatprep.subr.mxu0 0.0
      %1037 = vmatpush2.msra.mxu0 0.0
      %1038 = vmatprep.subr.mxu0 0.0
      %1039 = vmatpush2.msra.mxu0 0.0
      %1040 = vmatprep.subr.mxu0 0.0
      %1041 = vmatpush2.msra.mxu0 0.0
      %1042 = vmatprep.subr.mxu0 0.0
      %1043 = vmatpush2.msra.mxu0 0.0
      %1044 = vmatprep.subr.mxu0 0.0
      %1045 = vmatpush2.msra.mxu0 0.0
      %1046 = vmatprep.subr.mxu0 0.0
      %1047 = vmatpush2.msra.mxu0 0.0
      %1048 = vmatprep.subr.mxu0 0.0
      %1049 = vmatpush2.msra.mxu0 0.0
      %1050 = vmatprep.subr.mxu0 0.0
      %1051 = vmatpush2.msra.mxu0 0.0
      %1052 = vmatprep.subr.mxu0 0.0
      %1053 = vmatpush2.msra.mxu0 0.0
      %1054 = vmatprep.subr.mxu0 0.0
      %1055 = vmatpush2.msra.mxu0 0.0
      %1056 = vmatprep.subr.mxu0 0.0
      %1057 = vmatpush2.msra.mxu0 0.0
      %1058 = vmatprep.mubr.f32.mxu0 0.0
      %1059 = vmatmul.mubr.f32.gmra.mxu0 %v882
      %v1060 = vpop.f32.mrf.mxu0
      %v1061 = vadd.f32 %v986, %v1060
      %v1062 = vpop.f32.mrf.mxu0
      %1063 = vmatprep.mubr.f32.mxu0 0.0
      %1064 = vmatmul.mubr.f32.gmra.mxu0 %v883
      %v1065 = vpop.f32.mrf.mxu0
      %v1066 = vadd.f32 %v991, %v1065
      %v1067 = vpop.f32.mrf.mxu0
      %1068 = vdwg.mxu0
      %v1069 = vld [vmem:[#allocation3 + $0x2] sm:$0xff]
      %v1070 = vld [vmem:[#allocation3 + $0xa] sm:$0xff]
      %s1071 = scalar_lea.vmem %s5, 256
      %v1072 = vld [vmem:[%s1071] sm:$0xff]
      %v1073 = vld [vmem:[%s1071 + $0x8] sm:$0xff]
      %v1074 = vld [vmem:[%s1071 + $0x10] sm:$0xff]
      %v1075 = vld [vmem:[%s1071 + $0x18] sm:$0xff]
      %v1076 = vld [vmem:[%s1071 + $0x20] sm:$0xff]
      %v1077 = vld [vmem:[%s1071 + $0x28] sm:$0xff]
      %v1078 = vld [vmem:[%s1071 + $0x30] sm:$0xff]
      %v1079 = vld [vmem:[%s1071 + $0x38] sm:$0xff]
      %v1080 = vld [vmem:[%s1071 + $0x40] sm:$0xff]
      %v1081 = vld [vmem:[%s1071 + $0x48] sm:$0xff]
      %v1082 = vld [vmem:[%s1071 + $0x50] sm:$0xff]
      %v1083 = vld [vmem:[%s1071 + $0x58] sm:$0xff]
      %v1084 = vld [vmem:[%s1071 + $0x60] sm:$0xff]
      %v1085 = vld [vmem:[%s1071 + $0x68] sm:$0xff]
      %v1086 = vld [vmem:[%s1071 + $0x70] sm:$0xff]
      %v1087 = vld [vmem:[%s1071 + $0x78] sm:$0xff]
      %1088 = vmatprep.subr.mxu0 0.0
      %1089 = vmatpush1.msra.mxu0 %v1087
      %1090 = vmatprep.subr.mxu0 0.0
      %1091 = vmatpush1.msra.mxu0 %v1086
      %1092 = vmatprep.subr.mxu0 0.0
      %1093 = vmatpush1.msra.mxu0 %v1085
      %1094 = vmatprep.subr.mxu0 0.0
      %1095 = vmatpush1.msra.mxu0 %v1084
      %1096 = vmatprep.subr.mxu0 0.0
      %1097 = vmatpush1.msra.mxu0 %v1083
      %1098 = vmatprep.subr.mxu0 0.0
      %1099 = vmatpush1.msra.mxu0 %v1082
      %1100 = vmatprep.subr.mxu0 0.0
      %1101 = vmatpush1.msra.mxu0 %v1081
      %1102 = vmatprep.subr.mxu0 0.0
      %1103 = vmatpush1.msra.mxu0 %v1080
      %1104 = vmatprep.subr.mxu0 0.0
      %1105 = vmatpush1.msra.mxu0 %v1079
      %1106 = vmatprep.subr.mxu0 0.0
      %1107 = vmatpush1.msra.mxu0 %v1078
      %1108 = vmatprep.subr.mxu0 0.0
      %1109 = vmatpush1.msra.mxu0 %v1077
      %1110 = vmatprep.subr.mxu0 0.0
      %1111 = vmatpush1.msra.mxu0 %v1076
      %1112 = vmatprep.subr.mxu0 0.0
      %1113 = vmatpush1.msra.mxu0 %v1075
      %1114 = vmatprep.subr.mxu0 0.0
      %1115 = vmatpush1.msra.mxu0 %v1074
      %1116 = vmatprep.subr.mxu0 0.0
      %1117 = vmatpush1.msra.mxu0 %v1073
      %1118 = vmatprep.subr.mxu0 0.0
      %1119 = vmatpush1.msra.mxu0 %v1072
      %1120 = vmatprep.subr.mxu0 0.0
      %1121 = vmatpush2.msra.mxu0 0.0
      %1122 = vmatprep.subr.mxu0 0.0
      %1123 = vmatpush2.msra.mxu0 0.0
      %1124 = vmatprep.subr.mxu0 0.0
      %1125 = vmatpush2.msra.mxu0 0.0
      %1126 = vmatprep.subr.mxu0 0.0
      %1127 = vmatpush2.msra.mxu0 0.0
      %1128 = vmatprep.subr.mxu0 0.0
      %1129 = vmatpush2.msra.mxu0 0.0
      %1130 = vmatprep.subr.mxu0 0.0
      %1131 = vmatpush2.msra.mxu0 0.0
      %1132 = vmatprep.subr.mxu0 0.0
      %1133 = vmatpush2.msra.mxu0 0.0
      %1134 = vmatprep.subr.mxu0 0.0
      %1135 = vmatpush2.msra.mxu0 0.0
      %1136 = vmatprep.subr.mxu0 0.0
      %1137 = vmatpush2.msra.mxu0 0.0
      %1138 = vmatprep.subr.mxu0 0.0
      %1139 = vmatpush2.msra.mxu0 0.0
      %1140 = vmatprep.subr.mxu0 0.0
      %1141 = vmatpush2.msra.mxu0 0.0
      %1142 = vmatprep.subr.mxu0 0.0
      %1143 = vmatpush2.msra.mxu0 0.0
      %1144 = vmatprep.subr.mxu0 0.0
      %1145 = vmatpush2.msra.mxu0 0.0
      %1146 = vmatprep.subr.mxu0 0.0
      %1147 = vmatpush2.msra.mxu0 0.0
      %1148 = vmatprep.subr.mxu0 0.0
      %1149 = vmatpush2.msra.mxu0 0.0
      %1150 = vmatprep.subr.mxu0 0.0
      %1151 = vmatpush2.msra.mxu0 0.0
      %1152 = vmatprep.mubr.f32.mxu0 0.0
      %1153 = vmatmul.mubr.f32.gmra.mxu0 %v1069
      %v1154 = vpop.f32.mrf.mxu0
      %v1155 = vadd.f32 0.0, %v1154
      %v1156 = vpop.f32.mrf.mxu0
      %1157 = vmatprep.mubr.f32.mxu0 0.0
      %1158 = vmatmul.mubr.f32.gmra.mxu0 %v1070
      %v1159 = vpop.f32.mrf.mxu0
      %v1160 = vadd.f32 0.0, %v1159
      %v1161 = vpop.f32.mrf.mxu0
      %1162 = vdwg.mxu0
      %v1163 = vadd.f32 %v1061, %v1155
      %v1164 = vadd.f32 %v1066, %v1160
      %v1165 = vld [vmem:[%s6] sm:$0x1]
      %v1167 = vlaneseq
      %v1168 = vshrl.u32 %v1167, 7
      %v1169 = vsub.s32 0, %v1168
      %v1170 = vrot.slane %v1165, %v1169
      %v1172 = vadd.f32 %v1163, %v1170
      %v1173 = vadd.f32 %v1164, %v1170
      %1174 = vst [vmem:[%s278] sm:$0xff] %v1172
      %1175 = vst [vmem:[%s278 + $0x8] sm:$0xff] %v1173
      %p1176 = scmp.lt.s32.totalorder %s18, 1
      %s1177 = scalar_select %p1176, %s18, 1
      %s1178 = smul.addr %s1177, 2
      %s1179 = smul.addr %s1178, 8
      %s1180 = scalar_lea.vmem %s7, %s1179
      // Predicated region
      $region53: #{triple_conv_forward.1} parent=47 // pred_check
        %p1181 = pneg %p188
      $region54: #{triple_conv_forward.1} parent=47 // pred_check_branch
        %1183 = sbr.rel (%p1181) target = $region56
      $region55: #{triple_conv_forward.1} parent=47 // pred_region
        _
      $region56: #{triple_conv_forward.1} parent=47 // pred_fallthru
        _
    $region48: #{triple_conv_forward.1} parent=5 // pred_fallthru
      _
    %p1184 = scmp.le.s32.totalorder 2, %s13
    // Predicated region
    $region57: #{triple_conv_forward.1} parent=5 // pred_check
      %p1185 = pneg %p1184
    $region58: #{triple_conv_forward.1} parent=5 // pred_check_branch
      %1187 = sbr.rel (%p1185) target = $region60
    $region59: #{triple_conv_forward.1} parent=5 // pred_region
      %s1188 = ssub.s32 %s13, 2
      // Predicated region
      $region61: #{triple_conv_forward.1} parent=59 // pred_check
        %p1189 = pneg %p194
      $region62: #{triple_conv_forward.1} parent=59 // pred_check_branch
        %1191 = sbr.rel (%p1189) target = $region64
      $region63: #{triple_conv_forward.1} parent=59 // pred_region
        %p1192 = scmp.lt.s32.totalorder %s19, 1
        %s1193 = scalar_select %p1192, %s19, 1
        %s1194 = smul.addr %s1193, 2
        %s1195 = smul.addr %s1194, 8
        %s1196 = scalar_lea.vmem %s7, %s1195
      $region64: #{triple_conv_forward.1} parent=59 // pred_fallthru
        _
    $region60: #{triple_conv_forward.1} parent=5 // pred_fallthru
      _
  $region6: #{triple_conv_forward.1} parent=0 // loop_footer
    %s17 = sadd.s32 1, %s13
  $region7: #{triple_conv_forward.1} parent=0 // loop_footer_branch
    %12 = sbr.rel target = $region3
  $region8: #{triple_conv_forward.1} parent=0 // loop_exit
    _

</llo_original>
